<compile_context>
chip_gen: v6e
topology: v6e:2x2x1
jax: 0.10.0
libtpu: 0.0.40
codegen_flags: <defaults>
</compile_context>

<pallas_src>
import math

import jax
import jax.numpy as jnp
from jax import lax
from jax.experimental import pallas as pl
from jax.experimental.pallas import tpu as pltpu  # noqa: F401  (TPU backend assumed)

# ----- model hyper-parameters (cfg.transformer.*) -----
INPUT_SIZE = 16
HIDDEN = 32
NUM_LAYERS = 2
NUM_HEADS = 4
FEEDFORWARD = 64
HEAD_DIM = HIDDEN // NUM_HEADS
LN_EPS = 1e-5

BATCH = 2
SEQ = 8
BS = BATCH * SEQ                     # tokens per kernel call (batch folded into sublanes)

# ----- params_pack layout (lane width WP = 96, all row offsets multiples of 8) -----
WP = 3 * HIDDEN                      # 96
L_WQKV = 0                           # (HIDDEN, 3*HIDDEN)      Wq*scale | Wk | Wv
L_VECS = 32                          # 8-row vector block:
                                     #   0: bqkv (96)  1: bo (32)  2: ln1w  3: ln1b
                                     #   4: ff1b (64)  5: ff2b     6: ln2w  7: ln2b
L_WO = 40                            # (HIDDEN, HIDDEN)
L_FF1 = 72                           # (HIDDEN, FEEDFORWARD)
L_FF2 = 104                          # (FEEDFORWARD, HIDDEN)
LAYER_ROWS = 168
EMB_OFF = 0                          # (INPUT_SIZE, HIDDEN)
LAYER_OFF = 16
OUTW_OFF = LAYER_OFF + NUM_LAYERS * LAYER_ROWS   # 352, (HIDDEN, INPUT_SIZE)
OUTB_OFF = OUTW_OFF + HIDDEN                     # 384, (1, INPUT_SIZE)
P_ROWS = OUTB_OFF + 8                            # 392

# ----- consts_pack layout (lane width WC = 32) -----
WC = HIDDEN                          # 32
PE_OFF = 0                           # (BS, HIDDEN)  batch-tiled PE + emb bias
HM_OFF = PE_OFF + BS                 # 16  (NUM_HEADS*BS, HIDDEN) head-block lane mask
AM_OFF = HM_OFF + NUM_HEADS * BS     # 80  (NUM_HEADS*BS, BS)     additive batch mask
POOL_OFF = AM_OFF + NUM_HEADS * BS   # 144 (BATCH, BS)            mean-pool matrix
C_ROWS = POOL_OFF + 8                # 152

# ----- advisory cost estimate for the XLA scheduler -----
_FLOPS = 2 * (
    BS * INPUT_SIZE * HIDDEN
    + NUM_LAYERS * (
        BS * HIDDEN * 3 * HIDDEN           # fused QKV projection
        + (NUM_HEADS * BS) * HIDDEN * BS   # batched scores
        + (NUM_HEADS * BS) * BS * HIDDEN   # batched attn @ V
        + BS * HIDDEN * HIDDEN             # attention out-proj
        + BS * HIDDEN * FEEDFORWARD        # FF1
        + BS * FEEDFORWARD * HIDDEN)       # FF2
    + BS * HIDDEN * INPUT_SIZE             # output projection
    + BATCH * BS * INPUT_SIZE)             # pooling matmul
_TRANSC = NUM_LAYERS * (NUM_HEADS * BS * BS + NUM_HEADS * BS + 2 * BS)
_BYTES = 4 * (BS * INPUT_SIZE + P_ROWS * WP + C_ROWS * WC + BATCH * INPUT_SIZE)


def _layer_norm(x, w, b):
    # E[x^2] - E[x]^2 form: two independent lane reductions (overlap on XLU),
    # rsqrt on the EUP slot.  x: (T, H); w/b: (1, H).
    inv_h = 1.0 / HIDDEN
    mean = jnp.sum(x, axis=-1, keepdims=True) * inv_h
    msq = jnp.sum(x * x, axis=-1, keepdims=True) * inv_h
    var = msq - mean * mean
    return (x - mean) * lax.rsqrt(var + LN_EPS) * w + b


def transformer_kernel(x_ref, p_ref, c_ref, o_ref):
    f32 = jnp.float32

    def dot(a, b):
        return jnp.dot(a, b, preferred_element_type=f32)

    x = x_ref[...]                                     # (BS, INPUT)

    pe_plus = c_ref[PE_OFF:PE_OFF + BS, :]             # (BS, H)  tiled PE + emb bias
    hm = c_ref[HM_OFF:HM_OFF + NUM_HEADS * BS, :]      # (4*BS, H) head-block lane mask
    amask = c_ref[AM_OFF:AM_OFF + NUM_HEADS * BS, 0:BS]  # (4*BS, BS) cross-batch -1e30
    pool = c_ref[POOL_OFF:POOL_OFF + BATCH, 0:BS]      # (B, BS) per-batch seq mean

    # embedding: Linear(input_size, hidden); bias folded into pe_plus
    emb_w = p_ref[EMB_OFF:EMB_OFF + INPUT_SIZE, 0:HIDDEN]
    h = dot(x, emb_w) + pe_plus                        # (BS, H)

    for l in range(NUM_LAYERS):
        off = LAYER_OFF + l * LAYER_ROWS
        wqkv = p_ref[off + L_WQKV:off + L_WQKV + HIDDEN, 0:WP]        # (H, 3H)
        vecs = p_ref[off + L_VECS:off + L_VECS + 8, 0:WP]             # (8, 96)
        wo = p_ref[off + L_WO:off + L_WO + HIDDEN, 0:HIDDEN]          # (H, H)
        ff1w = p_ref[off + L_FF1:off + L_FF1 + HIDDEN, 0:FEEDFORWARD]  # (H, FF)
        ff2w = p_ref[off + L_FF2:off + L_FF2 + FEEDFORWARD, 0:HIDDEN]  # (FF, H)

        bqkv = vecs[0:1, 0:WP]
        bo = vecs[1:2, 0:HIDDEN]
        ln1w = vecs[2:3, 0:HIDDEN]
        ln1b = vecs[3:4, 0:HIDDEN]
        ff1b = vecs[4:5, 0:FEEDFORWARD]
        ff2b = vecs[5:6, 0:HIDDEN]
        ln2w = vecs[6:7, 0:HIDDEN]
        ln2b = vecs[7:8, 0:HIDDEN]

        # ---- self attention (post-norm encoder layer, eval dropout) ----
        # fused QKV projection: one MXU push; 1/sqrt(head_dim) pre-folded into Wq/bq
        qkv = dot(h, wqkv) + bqkv                      # (BS, 3H)
        q = qkv[:, 0:HIDDEN]
        k = qkv[:, HIDDEN:2 * HIDDEN]
        v = qkv[:, 2 * HIDDEN:3 * HIDDEN]

        # all 4 heads batched along sublanes: block h of q_stack = q * head_mask_h
        q_stack = jnp.concatenate([q, q, q, q], axis=0) * hm          # (4*BS, H)
        # scores: contract last-with-last (no explicit K transpose)
        s = lax.dot_general(q_stack, k, (((1,), (1,)), ((), ())),
                            preferred_element_type=f32)               # (4*BS, BS)
        s = s + amask
        # softmax; row-max subtraction dropped (bounded inference-scale logits,
        # -1e30 masked entries underflow exp to exact 0); reciprocal on EUP
        p = jnp.exp(s)
        p = p * pl.reciprocal(jnp.sum(p, axis=-1, keepdims=True), approx=True)

        a = dot(p, v) * hm                             # (4*BS, H) per-head outputs
        # recombine heads: pick block h's rows for head-h lanes == concat of heads
        attn = (a[0 * BS:1 * BS] + a[1 * BS:2 * BS]
                + a[2 * BS:3 * BS] + a[3 * BS:4 * BS])                # (BS, H)
        attn = dot(attn, wo) + bo

        h = _layer_norm(h + attn, ln1w, ln1b)

        # ---- feed forward ----
        ff = jnp.maximum(dot(h, ff1w) + ff1b, 0.0)
        ff = dot(ff, ff2w) + ff2b
        h = _layer_norm(h + ff, ln2w, ln2b)

    # output projection, per-batch sequence mean via one pooling matmul,
    # output bias added after pooling (pool rows sum to 1)
    out_w = p_ref[OUTW_OFF:OUTW_OFF + HIDDEN, 0:INPUT_SIZE]
    out_b = p_ref[OUTB_OFF:OUTB_OFF + 1, 0:INPUT_SIZE]
    out = dot(h, out_w)                                # (BS, INPUT)
    o_ref[...] = dot(pool, out) + out_b                # (B, INPUT), single store


def make_params(key):
    ks = jax.random.split(key, 20)

    def init(k, shape, fan_in):
        return (jax.random.normal(k, shape, jnp.float32) / math.sqrt(fan_in)).astype(jnp.float32)

    return dict(
        emb_w=init(ks[0], (INPUT_SIZE, HIDDEN), INPUT_SIZE),
        emb_b=init(ks[1], (1, HIDDEN), HIDDEN),
        wq=init(ks[2], (NUM_LAYERS, HIDDEN, HIDDEN), HIDDEN),
        bq=init(ks[3], (NUM_LAYERS, 1, HIDDEN), HIDDEN),
        wk=init(ks[4], (NUM_LAYERS, HIDDEN, HIDDEN), HIDDEN),
        bk=init(ks[5], (NUM_LAYERS, 1, HIDDEN), HIDDEN),
        wv=init(ks[6], (NUM_LAYERS, HIDDEN, HIDDEN), HIDDEN),
        bv=init(ks[7], (NUM_LAYERS, 1, HIDDEN), HIDDEN),
        wo=init(ks[8], (NUM_LAYERS, HIDDEN, HIDDEN), HIDDEN),
        bo=init(ks[9], (NUM_LAYERS, 1, HIDDEN), HIDDEN),
        ln1_w=jnp.ones((NUM_LAYERS, 1, HIDDEN), jnp.float32),
        ln1_b=jnp.zeros((NUM_LAYERS, 1, HIDDEN), jnp.float32),
        ln2_w=jnp.ones((NUM_LAYERS, 1, HIDDEN), jnp.float32),
        ln2_b=jnp.zeros((NUM_LAYERS, 1, HIDDEN), jnp.float32),
        ff1_w=init(ks[10], (NUM_LAYERS, HIDDEN, FEEDFORWARD), HIDDEN),
        ff1_b=init(ks[11], (NUM_LAYERS, 1, FEEDFORWARD), FEEDFORWARD),
        ff2_w=init(ks[12], (NUM_LAYERS, FEEDFORWARD, HIDDEN), FEEDFORWARD),
        ff2_b=init(ks[13], (NUM_LAYERS, 1, HIDDEN), HIDDEN),
        out_w=init(ks[14], (HIDDEN, INPUT_SIZE), HIDDEN),
        out_b=init(ks[15], (1, INPUT_SIZE), INPUT_SIZE),
    )


def positional_encoding(seq_len, hidden):
    position = jnp.arange(seq_len, dtype=jnp.float32)[:, None]
    div_term = jnp.exp(jnp.arange(0, hidden, 2, dtype=jnp.float32)
                       * (-(math.log(10000.0) / hidden)))
    pe = jnp.zeros((seq_len, hidden), jnp.float32)
    pe = pe.at[:, 0::2].set(jnp.sin(position * div_term))
    pe = pe.at[:, 1::2].set(jnp.cos(position * div_term))
    return pe


def pack_params(params):
    """Stack all weights / biases / LN params into one (P_ROWS, 96) f32 slab."""
    scale = 1.0 / math.sqrt(HEAD_DIM)
    pmat = jnp.zeros((P_ROWS, WP), jnp.float32)
    pmat = pmat.at[EMB_OFF:EMB_OFF + INPUT_SIZE, 0:HIDDEN].set(params["emb_w"])
    for l in range(NUM_LAYERS):
        off = LAYER_OFF + l * LAYER_ROWS
        wqkv = jnp.concatenate(
            [params["wq"][l] * scale, params["wk"][l], params["wv"][l]], axis=1)
        pmat = pmat.at[off + L_WQKV:off + L_WQKV + HIDDEN, 0:WP].set(wqkv)
        voff = off + L_VECS
        bqkv = jnp.concatenate(
            [params["bq"][l] * scale, params["bk"][l], params["bv"][l]], axis=1)
        pmat = pmat.at[voff + 0, 0:WP].set(bqkv[0])
        pmat = pmat.at[voff + 1, 0:HIDDEN].set(params["bo"][l][0])
        pmat = pmat.at[voff + 2, 0:HIDDEN].set(params["ln1_w"][l][0])
        pmat = pmat.at[voff + 3, 0:HIDDEN].set(params["ln1_b"][l][0])
        pmat = pmat.at[voff + 4, 0:FEEDFORWARD].set(params["ff1_b"][l][0])
        pmat = pmat.at[voff + 5, 0:HIDDEN].set(params["ff2_b"][l][0])
        pmat = pmat.at[voff + 6, 0:HIDDEN].set(params["ln2_w"][l][0])
        pmat = pmat.at[voff + 7, 0:HIDDEN].set(params["ln2_b"][l][0])
        pmat = pmat.at[off + L_WO:off + L_WO + HIDDEN, 0:HIDDEN].set(params["wo"][l])
        pmat = pmat.at[off + L_FF1:off + L_FF1 + HIDDEN, 0:FEEDFORWARD].set(params["ff1_w"][l])
        pmat = pmat.at[off + L_FF2:off + L_FF2 + FEEDFORWARD, 0:HIDDEN].set(params["ff2_w"][l])
    pmat = pmat.at[OUTW_OFF:OUTW_OFF + HIDDEN, 0:INPUT_SIZE].set(params["out_w"])
    pmat = pmat.at[OUTB_OFF, 0:INPUT_SIZE].set(params["out_b"][0])
    return pmat


def pack_consts(params, pe):
    """Stack PE(+emb bias), head masks, batch mask and pool matrix into (C_ROWS, 32)."""
    cmat = jnp.zeros((C_ROWS, WC), jnp.float32)
    pe_plus = jnp.tile(pe, (BATCH, 1)) + params["emb_b"]               # (BS, H)
    cmat = cmat.at[PE_OFF:PE_OFF + BS, :].set(pe_plus)
    lane_head = jnp.arange(HIDDEN, dtype=jnp.int32) // HEAD_DIM
    blk = jnp.arange(NUM_HEADS * BS, dtype=jnp.int32) // BS
    hm = (lane_head[None, :] == blk[:, None]).astype(jnp.float32)      # (4*BS, H)
    cmat = cmat.at[HM_OFF:HM_OFF + NUM_HEADS * BS, :].set(hm)
    tok_batch = jnp.arange(BS, dtype=jnp.int32) // SEQ
    amask = jnp.where(tok_batch[:, None] == tok_batch[None, :], 0.0, -1e30)
    cmat = cmat.at[AM_OFF:AM_OFF + NUM_HEADS * BS, 0:BS].set(
        jnp.tile(amask.astype(jnp.float32), (NUM_HEADS, 1)))
    pool = (jnp.arange(BATCH, dtype=jnp.int32)[:, None] == tok_batch[None, :]
            ).astype(jnp.float32) / float(SEQ)
    cmat = cmat.at[POOL_OFF:POOL_OFF + BATCH, 0:BS].set(pool)
    return cmat


@jax.jit
def transformer_forward(x, params_pack, consts_pack):
    B, S, I = x.shape
    x_flat = x.reshape(B * S, I)                       # fold batch outside the kernel
    out = pl.pallas_call(
        transformer_kernel,
        out_shape=jax.ShapeDtypeStruct((B, I), jnp.float32),
        cost_estimate=pl.CostEstimate(flops=_FLOPS, transcendentals=_TRANSC,
                                      bytes_accessed=_BYTES),
    )(x_flat, params_pack, consts_pack)
    return out.reshape(B, 1, I)


def reference_forward(x, pe, params):
    """Pure-JAX reference mirroring the PyTorch module (eval mode)."""
    def ln(v, w, b):
        m = jnp.mean(v, -1, keepdims=True)
        var = jnp.mean((v - m) ** 2, -1, keepdims=True)
        return (v - m) / jnp.sqrt(var + LN_EPS) * w + b

    h = x @ params["emb_w"] + params["emb_b"]          # (B,S,H)
    h = h + pe[None]
    scale = 1.0 / math.sqrt(HEAD_DIM)
    for l in range(NUM_LAYERS):
        q = h @ params["wq"][l] + params["bq"][l]
        k = h @ params["wk"][l] + params["bk"][l]
        v = h @ params["wv"][l] + params["bv"][l]
        B, S, _ = q.shape
        qh = q.reshape(B, S, NUM_HEADS, HEAD_DIM).transpose(0, 2, 1, 3)
        kh = k.reshape(B, S, NUM_HEADS, HEAD_DIM).transpose(0, 2, 1, 3)
        vh = v.reshape(B, S, NUM_HEADS, HEAD_DIM).transpose(0, 2, 1, 3)
        s = jnp.einsum("bhqd,bhkd->bhqk", qh, kh) * scale
        p = jax.nn.softmax(s, axis=-1)
        a = jnp.einsum("bhqk,bhkd->bhqd", p, vh).transpose(0, 2, 1, 3).reshape(B, S, HIDDEN)
        a = a @ params["wo"][l] + params["bo"][l]
        h = ln(h + a, params["ln1_w"][l], params["ln1_b"][l])
        ff = jnp.maximum(h @ params["ff1_w"][l] + params["ff1_b"][l], 0.0)
        ff = ff @ params["ff2_w"][l] + params["ff2_b"][l]
        h = ln(h + ff, params["ln2_w"][l], params["ln2_b"][l])
    out = h @ params["out_w"] + params["out_b"]
    return jnp.mean(out, axis=1, keepdims=True)


if __name__ == "__main__":
    key = jax.random.PRNGKey(0)
    kx, kp = jax.random.split(key)
    x = jax.random.normal(kx, (BATCH, SEQ, INPUT_SIZE), jnp.float32)
    params = make_params(kp)
    pe = positional_encoding(SEQ, HIDDEN)

    # Constant / parameter packing is hoisted out of the jitted forward: done once.
    params_pack = pack_params(params)
    consts_pack = pack_consts(params, pe)

    out = transformer_forward(x, params_pack, consts_pack)
    jax.block_until_ready(out)

    ref = reference_forward(x, pe, params)
    max_err = float(jnp.max(jnp.abs(out - ref)))
    assert out.shape == (BATCH, 1, INPUT_SIZE), out.shape
    # The exact-f32 path agrees to ~1e-6; the bound below leaves headroom for the
    # approximate EUP reciprocal in the softmax while still catching real errors.
    assert max_err < 5e-3, f"mismatch vs reference: {max_err}"

    print("KERNEL_OK")
</pallas_src>

<mosaic_0001>
module attributes {stable_mosaic.version = 11 : i64} {
  func.func @transformer_kernel(%arg0: memref<16x16xf32, #tpu.memory_space<vmem>>, %arg1: memref<392x96xf32, #tpu.memory_space<vmem>>, %arg2: memref<152x32xf32, #tpu.memory_space<vmem>>, %arg3: memref<2x16xf32, #tpu.memory_space<vmem>>) attributes {dimension_semantics = [], scalar_prefetch = 0 : i64, scratch_operands = 0 : i64, tpu.core_type = #tpu.core_type<tc>} {
    %c0 = arith.constant 0 : index
    %c0_0 = arith.constant 0 : index
    %0 = vector.load %arg0[%c0, %c0_0] : memref<16x16xf32, #tpu.memory_space<vmem>>, vector<16x16xf32>
    %c0_1 = arith.constant 0 : index
    %c0_2 = arith.constant 0 : index
    %1 = vector.load %arg2[%c0_1, %c0_2] : memref<152x32xf32, #tpu.memory_space<vmem>>, vector<16x32xf32>
    %c16 = arith.constant 16 : index
    %c0_3 = arith.constant 0 : index
    %2 = vector.load %arg2[%c16, %c0_3] : memref<152x32xf32, #tpu.memory_space<vmem>>, vector<64x32xf32>
    %c80 = arith.constant 80 : index
    %c0_4 = arith.constant 0 : index
    %3 = vector.load %arg2[%c80, %c0_4] : memref<152x32xf32, #tpu.memory_space<vmem>>, vector<64x16xf32>
    %c144 = arith.constant 144 : index
    %c0_5 = arith.constant 0 : index
    %4 = vector.load %arg2[%c144, %c0_5] : memref<152x32xf32, #tpu.memory_space<vmem>>, vector<2x16xf32>
    %c0_6 = arith.constant 0 : index
    %c0_7 = arith.constant 0 : index
    %5 = vector.load %arg1[%c0_6, %c0_7] : memref<392x96xf32, #tpu.memory_space<vmem>>, vector<16x32xf32>
    %cst = arith.constant dense<0.000000e+00> : vector<16x32xf32>
    %6 = tpu.matmul %0, %5, %cst {dimension_numbers = #tpu.dot_dimension_numbers<[1], [0], [0], [1], [0, 0, 1, 1], [], []>} : vector<16x16xf32>, vector<16x32xf32>, vector<16x32xf32> -> vector<16x32xf32>
    %7 = arith.addf %6, %1 : vector<16x32xf32>
    %c16_8 = arith.constant 16 : index
    %c0_9 = arith.constant 0 : index
    %8 = vector.load %arg1[%c16_8, %c0_9] : memref<392x96xf32, #tpu.memory_space<vmem>>, vector<32x96xf32>
    %c48 = arith.constant 48 : index
    %c0_10 = arith.constant 0 : index
    %9 = vector.load %arg1[%c48, %c0_10] : memref<392x96xf32, #tpu.memory_space<vmem>>, vector<8x96xf32>
    %c56 = arith.constant 56 : index
    %c0_11 = arith.constant 0 : index
    %10 = vector.load %arg1[%c56, %c0_11] : memref<392x96xf32, #tpu.memory_space<vmem>>, vector<32x32xf32>
    %c88 = arith.constant 88 : index
    %c0_12 = arith.constant 0 : index
    %11 = vector.load %arg1[%c88, %c0_12] : memref<392x96xf32, #tpu.memory_space<vmem>>, vector<32x64xf32>
    %c120 = arith.constant 120 : index
    %c0_13 = arith.constant 0 : index
    %12 = vector.load %arg1[%c120, %c0_13] : memref<392x96xf32, #tpu.memory_space<vmem>>, vector<64x32xf32>
    %13 = vector.extract_strided_slice %9 {offsets = [0, 0], sizes = [1, 96], strides = [1, 1]} : vector<8x96xf32> to vector<1x96xf32>
    %14 = vector.extract_strided_slice %9 {offsets = [1, 0], sizes = [1, 32], strides = [1, 1]} : vector<8x96xf32> to vector<1x32xf32>
    %15 = vector.extract_strided_slice %9 {offsets = [2, 0], sizes = [1, 32], strides = [1, 1]} : vector<8x96xf32> to vector<1x32xf32>
    %16 = vector.extract_strided_slice %9 {offsets = [3, 0], sizes = [1, 32], strides = [1, 1]} : vector<8x96xf32> to vector<1x32xf32>
    %17 = vector.extract_strided_slice %9 {offsets = [4, 0], sizes = [1, 64], strides = [1, 1]} : vector<8x96xf32> to vector<1x64xf32>
    %18 = vector.extract_strided_slice %9 {offsets = [5, 0], sizes = [1, 32], strides = [1, 1]} : vector<8x96xf32> to vector<1x32xf32>
    %19 = vector.extract_strided_slice %9 {offsets = [6, 0], sizes = [1, 32], strides = [1, 1]} : vector<8x96xf32> to vector<1x32xf32>
    %20 = vector.extract_strided_slice %9 {offsets = [7, 0], sizes = [1, 32], strides = [1, 1]} : vector<8x96xf32> to vector<1x32xf32>
    %cst_14 = arith.constant dense<0.000000e+00> : vector<16x96xf32>
    %21 = tpu.matmul %7, %8, %cst_14 {dimension_numbers = #tpu.dot_dimension_numbers<[1], [0], [0], [1], [0, 0, 1, 1], [], []>} : vector<16x32xf32>, vector<32x96xf32>, vector<16x96xf32> -> vector<16x96xf32>
    %22 = vector.broadcast %13 : vector<1x96xf32> to vector<16x96xf32>
    %23 = arith.addf %21, %22 : vector<16x96xf32>
    %24 = vector.extract_strided_slice %23 {offsets = [0, 0], sizes = [16, 32], strides = [1, 1]} : vector<16x96xf32> to vector<16x32xf32>
    %25 = vector.extract_strided_slice %23 {offsets = [0, 32], sizes = [16, 32], strides = [1, 1]} : vector<16x96xf32> to vector<16x32xf32>
    %26 = vector.extract_strided_slice %23 {offsets = [0, 64], sizes = [16, 32], strides = [1, 1]} : vector<16x96xf32> to vector<16x32xf32>
    %27 = tpu.concatenate %24, %24, %24, %24 in 0 : vector<16x32xf32>, vector<16x32xf32>, vector<16x32xf32>, vector<16x32xf32> -> vector<64x32xf32>
    %28 = arith.mulf %27, %2 : vector<64x32xf32>
    %cst_15 = arith.constant dense<0.000000e+00> : vector<64x16xf32>
    %29 = tpu.matmul %28, %25, %cst_15 {dimension_numbers = #tpu.dot_dimension_numbers<[1], [1], [0], [0], [0, 0, 1, 0], [], []>} : vector<64x32xf32>, vector<16x32xf32>, vector<64x16xf32> -> vector<64x16xf32>
    %30 = arith.addf %29, %3 : vector<64x16xf32>
    %31 = math.exp %30 : vector<64x16xf32>
    %cst_16 = arith.constant dense<0.000000e+00> : vector<64xf32>
    %32 = vector.multi_reduction <add>, %31, %cst_16 [1] : vector<64x16xf32> to vector<64xf32>
    %33 = vector.shape_cast %32 : vector<64xf32> to vector<64x1xf32>
    %34 = tpu.reciprocal %33 {approx = true} : vector<64x1xf32> -> vector<64x1xf32>
    %35 = vector.broadcast %34 : vector<64x1xf32> to vector<64x16xf32>
    %36 = arith.mulf %31, %35 : vector<64x16xf32>
    %cst_17 = arith.constant dense<0.000000e+00> : vector<64x32xf32>
    %37 = tpu.matmul %36, %26, %cst_17 {dimension_numbers = #tpu.dot_dimension_numbers<[1], [0], [0], [1], [0, 0, 1, 1], [], []>} : vector<64x16xf32>, vector<16x32xf32>, vector<64x32xf32> -> vector<64x32xf32>
    %38 = arith.mulf %37, %2 : vector<64x32xf32>
    %39 = vector.extract_strided_slice %38 {offsets = [0, 0], sizes = [16, 32], strides = [1, 1]} : vector<64x32xf32> to vector<16x32xf32>
    %40 = vector.extract_strided_slice %38 {offsets = [16, 0], sizes = [16, 32], strides = [1, 1]} : vector<64x32xf32> to vector<16x32xf32>
    %41 = arith.addf %39, %40 : vector<16x32xf32>
    %42 = vector.extract_strided_slice %38 {offsets = [32, 0], sizes = [16, 32], strides = [1, 1]} : vector<64x32xf32> to vector<16x32xf32>
    %43 = arith.addf %41, %42 : vector<16x32xf32>
    %44 = vector.extract_strided_slice %38 {offsets = [48, 0], sizes = [16, 32], strides = [1, 1]} : vector<64x32xf32> to vector<16x32xf32>
    %45 = arith.addf %43, %44 : vector<16x32xf32>
    %cst_18 = arith.constant dense<0.000000e+00> : vector<16x32xf32>
    %46 = tpu.matmul %45, %10, %cst_18 {dimension_numbers = #tpu.dot_dimension_numbers<[1], [0], [0], [1], [0, 0, 1, 1], [], []>} : vector<16x32xf32>, vector<32x32xf32>, vector<16x32xf32> -> vector<16x32xf32>
    %47 = vector.broadcast %14 : vector<1x32xf32> to vector<16x32xf32>
    %48 = arith.addf %46, %47 : vector<16x32xf32>
    %49 = arith.addf %7, %48 : vector<16x32xf32>
    %cst_19 = arith.constant dense<0.000000e+00> : vector<16xf32>
    %50 = vector.multi_reduction <add>, %49, %cst_19 [1] : vector<16x32xf32> to vector<16xf32>
    %51 = vector.shape_cast %50 : vector<16xf32> to vector<16x1xf32>
    %cst_20 = arith.constant 3.125000e-02 : f32
    %52 = vector.broadcast %cst_20 : f32 to vector<16x1xf32>
    %53 = arith.mulf %51, %52 : vector<16x1xf32>
    %54 = arith.mulf %49, %49 : vector<16x32xf32>
    %cst_21 = arith.constant dense<0.000000e+00> : vector<16xf32>
    %55 = vector.multi_reduction <add>, %54, %cst_21 [1] : vector<16x32xf32> to vector<16xf32>
    %56 = vector.shape_cast %55 : vector<16xf32> to vector<16x1xf32>
    %cst_22 = arith.constant 3.125000e-02 : f32
    %57 = vector.broadcast %cst_22 : f32 to vector<16x1xf32>
    %58 = arith.mulf %56, %57 : vector<16x1xf32>
    %59 = arith.mulf %53, %53 : vector<16x1xf32>
    %60 = arith.subf %58, %59 : vector<16x1xf32>
    %61 = vector.broadcast %53 : vector<16x1xf32> to vector<16x32xf32>
    %62 = arith.subf %49, %61 : vector<16x32xf32>
    %cst_23 = arith.constant 9.99999974E-6 : f32
    %63 = vector.broadcast %cst_23 : f32 to vector<16x1xf32>
    %64 = arith.addf %60, %63 : vector<16x1xf32>
    %65 = math.rsqrt %64 : vector<16x1xf32>
    %66 = vector.broadcast %65 : vector<16x1xf32> to vector<16x32xf32>
    %67 = arith.mulf %62, %66 : vector<16x32xf32>
    %68 = vector.broadcast %15 : vector<1x32xf32> to vector<16x32xf32>
    %69 = arith.mulf %67, %68 : vector<16x32xf32>
    %70 = vector.broadcast %16 : vector<1x32xf32> to vector<16x32xf32>
    %71 = arith.addf %69, %70 : vector<16x32xf32>
    %cst_24 = arith.constant dense<0.000000e+00> : vector<16x64xf32>
    %72 = tpu.matmul %71, %11, %cst_24 {dimension_numbers = #tpu.dot_dimension_numbers<[1], [0], [0], [1], [0, 0, 1, 1], [], []>} : vector<16x32xf32>, vector<32x64xf32>, vector<16x64xf32> -> vector<16x64xf32>
    %73 = vector.broadcast %17 : vector<1x64xf32> to vector<16x64xf32>
    %74 = arith.addf %72, %73 : vector<16x64xf32>
    %cst_25 = arith.constant 0.000000e+00 : f32
    %75 = vector.broadcast %cst_25 : f32 to vector<16x64xf32>
    %76 = arith.maximumf %74, %75 : vector<16x64xf32>
    %cst_26 = arith.constant dense<0.000000e+00> : vector<16x32xf32>
    %77 = tpu.matmul %76, %12, %cst_26 {dimension_numbers = #tpu.dot_dimension_numbers<[1], [0], [0], [1], [0, 0, 1, 1], [], []>} : vector<16x64xf32>, vector<64x32xf32>, vector<16x32xf32> -> vector<16x32xf32>
    %78 = vector.broadcast %18 : vector<1x32xf32> to vector<16x32xf32>
    %79 = arith.addf %77, %78 : vector<16x32xf32>
    %80 = arith.addf %71, %79 : vector<16x32xf32>
    %cst_27 = arith.constant dense<0.000000e+00> : vector<16xf32>
    %81 = vector.multi_reduction <add>, %80, %cst_27 [1] : vector<16x32xf32> to vector<16xf32>
    %82 = vector.shape_cast %81 : vector<16xf32> to vector<16x1xf32>
    %cst_28 = arith.constant 3.125000e-02 : f32
    %83 = vector.broadcast %cst_28 : f32 to vector<16x1xf32>
    %84 = arith.mulf %82, %83 : vector<16x1xf32>
    %85 = arith.mulf %80, %80 : vector<16x32xf32>
    %cst_29 = arith.constant dense<0.000000e+00> : vector<16xf32>
    %86 = vector.multi_reduction <add>, %85, %cst_29 [1] : vector<16x32xf32> to vector<16xf32>
    %87 = vector.shape_cast %86 : vector<16xf32> to vector<16x1xf32>
    %cst_30 = arith.constant 3.125000e-02 : f32
    %88 = vector.broadcast %cst_30 : f32 to vector<16x1xf32>
    %89 = arith.mulf %87, %88 : vector<16x1xf32>
    %90 = arith.mulf %84, %84 : vector<16x1xf32>
    %91 = arith.subf %89, %90 : vector<16x1xf32>
    %92 = vector.broadcast %84 : vector<16x1xf32> to vector<16x32xf32>
    %93 = arith.subf %80, %92 : vector<16x32xf32>
    %cst_31 = arith.constant 9.99999974E-6 : f32
    %94 = vector.broadcast %cst_31 : f32 to vector<16x1xf32>
    %95 = arith.addf %91, %94 : vector<16x1xf32>
    %96 = math.rsqrt %95 : vector<16x1xf32>
    %97 = vector.broadcast %96 : vector<16x1xf32> to vector<16x32xf32>
    %98 = arith.mulf %93, %97 : vector<16x32xf32>
    %99 = vector.broadcast %19 : vector<1x32xf32> to vector<16x32xf32>
    %100 = arith.mulf %98, %99 : vector<16x32xf32>
    %101 = vector.broadcast %20 : vector<1x32xf32> to vector<16x32xf32>
    %102 = arith.addf %100, %101 : vector<16x32xf32>
    %c184 = arith.constant 184 : index
    %c0_32 = arith.constant 0 : index
    %103 = vector.load %arg1[%c184, %c0_32] : memref<392x96xf32, #tpu.memory_space<vmem>>, vector<32x96xf32>
    %c216 = arith.constant 216 : index
    %c0_33 = arith.constant 0 : index
    %104 = vector.load %arg1[%c216, %c0_33] : memref<392x96xf32, #tpu.memory_space<vmem>>, vector<8x96xf32>
    %c224 = arith.constant 224 : index
    %c0_34 = arith.constant 0 : index
    %105 = vector.load %arg1[%c224, %c0_34] : memref<392x96xf32, #tpu.memory_space<vmem>>, vector<32x32xf32>
    %c256 = arith.constant 256 : index
    %c0_35 = arith.constant 0 : index
    %106 = vector.load %arg1[%c256, %c0_35] : memref<392x96xf32, #tpu.memory_space<vmem>>, vector<32x64xf32>
    %c288 = arith.constant 288 : index
    %c0_36 = arith.constant 0 : index
    %107 = vector.load %arg1[%c288, %c0_36] : memref<392x96xf32, #tpu.memory_space<vmem>>, vector<64x32xf32>
    %108 = vector.extract_strided_slice %104 {offsets = [0, 0], sizes = [1, 96], strides = [1, 1]} : vector<8x96xf32> to vector<1x96xf32>
    %109 = vector.extract_strided_slice %104 {offsets = [1, 0], sizes = [1, 32], strides = [1, 1]} : vector<8x96xf32> to vector<1x32xf32>
    %110 = vector.extract_strided_slice %104 {offsets = [2, 0], sizes = [1, 32], strides = [1, 1]} : vector<8x96xf32> to vector<1x32xf32>
    %111 = vector.extract_strided_slice %104 {offsets = [3, 0], sizes = [1, 32], strides = [1, 1]} : vector<8x96xf32> to vector<1x32xf32>
    %112 = vector.extract_strided_slice %104 {offsets = [4, 0], sizes = [1, 64], strides = [1, 1]} : vector<8x96xf32> to vector<1x64xf32>
    %113 = vector.extract_strided_slice %104 {offsets = [5, 0], sizes = [1, 32], strides = [1, 1]} : vector<8x96xf32> to vector<1x32xf32>
    %114 = vector.extract_strided_slice %104 {offsets = [6, 0], sizes = [1, 32], strides = [1, 1]} : vector<8x96xf32> to vector<1x32xf32>
    %115 = vector.extract_strided_slice %104 {offsets = [7, 0], sizes = [1, 32], strides = [1, 1]} : vector<8x96xf32> to vector<1x32xf32>
    %cst_37 = arith.constant dense<0.000000e+00> : vector<16x96xf32>
    %116 = tpu.matmul %102, %103, %cst_37 {dimension_numbers = #tpu.dot_dimension_numbers<[1], [0], [0], [1], [0, 0, 1, 1], [], []>} : vector<16x32xf32>, vector<32x96xf32>, vector<16x96xf32> -> vector<16x96xf32>
    %117 = vector.broadcast %108 : vector<1x96xf32> to vector<16x96xf32>
    %118 = arith.addf %116, %117 : vector<16x96xf32>
    %119 = vector.extract_strided_slice %118 {offsets = [0, 0], sizes = [16, 32], strides = [1, 1]} : vector<16x96xf32> to vector<16x32xf32>
    %120 = vector.extract_strided_slice %118 {offsets = [0, 32], sizes = [16, 32], strides = [1, 1]} : vector<16x96xf32> to vector<16x32xf32>
    %121 = vector.extract_strided_slice %118 {offsets = [0, 64], sizes = [16, 32], strides = [1, 1]} : vector<16x96xf32> to vector<16x32xf32>
    %122 = tpu.concatenate %119, %119, %119, %119 in 0 : vector<16x32xf32>, vector<16x32xf32>, vector<16x32xf32>, vector<16x32xf32> -> vector<64x32xf32>
    %123 = arith.mulf %122, %2 : vector<64x32xf32>
    %cst_38 = arith.constant dense<0.000000e+00> : vector<64x16xf32>
    %124 = tpu.matmul %123, %120, %cst_38 {dimension_numbers = #tpu.dot_dimension_numbers<[1], [1], [0], [0], [0, 0, 1, 0], [], []>} : vector<64x32xf32>, vector<16x32xf32>, vector<64x16xf32> -> vector<64x16xf32>
    %125 = arith.addf %124, %3 : vector<64x16xf32>
    %126 = math.exp %125 : vector<64x16xf32>
    %cst_39 = arith.constant dense<0.000000e+00> : vector<64xf32>
    %127 = vector.multi_reduction <add>, %126, %cst_39 [1] : vector<64x16xf32> to vector<64xf32>
    %128 = vector.shape_cast %127 : vector<64xf32> to vector<64x1xf32>
    %129 = tpu.reciprocal %128 {approx = true} : vector<64x1xf32> -> vector<64x1xf32>
    %130 = vector.broadcast %129 : vector<64x1xf32> to vector<64x16xf32>
    %131 = arith.mulf %126, %130 : vector<64x16xf32>
    %cst_40 = arith.constant dense<0.000000e+00> : vector<64x32xf32>
    %132 = tpu.matmul %131, %121, %cst_40 {dimension_numbers = #tpu.dot_dimension_numbers<[1], [0], [0], [1], [0, 0, 1, 1], [], []>} : vector<64x16xf32>, vector<16x32xf32>, vector<64x32xf32> -> vector<64x32xf32>
    %133 = arith.mulf %132, %2 : vector<64x32xf32>
    %134 = vector.extract_strided_slice %133 {offsets = [0, 0], sizes = [16, 32], strides = [1, 1]} : vector<64x32xf32> to vector<16x32xf32>
    %135 = vector.extract_strided_slice %133 {offsets = [16, 0], sizes = [16, 32], strides = [1, 1]} : vector<64x32xf32> to vector<16x32xf32>
    %136 = arith.addf %134, %135 : vector<16x32xf32>
    %137 = vector.extract_strided_slice %133 {offsets = [32, 0], sizes = [16, 32], strides = [1, 1]} : vector<64x32xf32> to vector<16x32xf32>
    %138 = arith.addf %136, %137 : vector<16x32xf32>
    %139 = vector.extract_strided_slice %133 {offsets = [48, 0], sizes = [16, 32], strides = [1, 1]} : vector<64x32xf32> to vector<16x32xf32>
    %140 = arith.addf %138, %139 : vector<16x32xf32>
    %cst_41 = arith.constant dense<0.000000e+00> : vector<16x32xf32>
    %141 = tpu.matmul %140, %105, %cst_41 {dimension_numbers = #tpu.dot_dimension_numbers<[1], [0], [0], [1], [0, 0, 1, 1], [], []>} : vector<16x32xf32>, vector<32x32xf32>, vector<16x32xf32> -> vector<16x32xf32>
    %142 = vector.broadcast %109 : vector<1x32xf32> to vector<16x32xf32>
    %143 = arith.addf %141, %142 : vector<16x32xf32>
    %144 = arith.addf %102, %143 : vector<16x32xf32>
    %cst_42 = arith.constant dense<0.000000e+00> : vector<16xf32>
    %145 = vector.multi_reduction <add>, %144, %cst_42 [1] : vector<16x32xf32> to vector<16xf32>
    %146 = vector.shape_cast %145 : vector<16xf32> to vector<16x1xf32>
    %cst_43 = arith.constant 3.125000e-02 : f32
    %147 = vector.broadcast %cst_43 : f32 to vector<16x1xf32>
    %148 = arith.mulf %146, %147 : vector<16x1xf32>
    %149 = arith.mulf %144, %144 : vector<16x32xf32>
    %cst_44 = arith.constant dense<0.000000e+00> : vector<16xf32>
    %150 = vector.multi_reduction <add>, %149, %cst_44 [1] : vector<16x32xf32> to vector<16xf32>
    %151 = vector.shape_cast %150 : vector<16xf32> to vector<16x1xf32>
    %cst_45 = arith.constant 3.125000e-02 : f32
    %152 = vector.broadcast %cst_45 : f32 to vector<16x1xf32>
    %153 = arith.mulf %151, %152 : vector<16x1xf32>
    %154 = arith.mulf %148, %148 : vector<16x1xf32>
    %155 = arith.subf %153, %154 : vector<16x1xf32>
    %156 = vector.broadcast %148 : vector<16x1xf32> to vector<16x32xf32>
    %157 = arith.subf %144, %156 : vector<16x32xf32>
    %cst_46 = arith.constant 9.99999974E-6 : f32
    %158 = vector.broadcast %cst_46 : f32 to vector<16x1xf32>
    %159 = arith.addf %155, %158 : vector<16x1xf32>
    %160 = math.rsqrt %159 : vector<16x1xf32>
    %161 = vector.broadcast %160 : vector<16x1xf32> to vector<16x32xf32>
    %162 = arith.mulf %157, %161 : vector<16x32xf32>
    %163 = vector.broadcast %110 : vector<1x32xf32> to vector<16x32xf32>
    %164 = arith.mulf %162, %163 : vector<16x32xf32>
    %165 = vector.broadcast %111 : vector<1x32xf32> to vector<16x32xf32>
    %166 = arith.addf %164, %165 : vector<16x32xf32>
    %cst_47 = arith.constant dense<0.000000e+00> : vector<16x64xf32>
    %167 = tpu.matmul %166, %106, %cst_47 {dimension_numbers = #tpu.dot_dimension_numbers<[1], [0], [0], [1], [0, 0, 1, 1], [], []>} : vector<16x32xf32>, vector<32x64xf32>, vector<16x64xf32> -> vector<16x64xf32>
    %168 = vector.broadcast %112 : vector<1x64xf32> to vector<16x64xf32>
    %169 = arith.addf %167, %168 : vector<16x64xf32>
    %cst_48 = arith.constant 0.000000e+00 : f32
    %170 = vector.broadcast %cst_48 : f32 to vector<16x64xf32>
    %171 = arith.maximumf %169, %170 : vector<16x64xf32>
    %cst_49 = arith.constant dense<0.000000e+00> : vector<16x32xf32>
    %172 = tpu.matmul %171, %107, %cst_49 {dimension_numbers = #tpu.dot_dimension_numbers<[1], [0], [0], [1], [0, 0, 1, 1], [], []>} : vector<16x64xf32>, vector<64x32xf32>, vector<16x32xf32> -> vector<16x32xf32>
    %173 = vector.broadcast %113 : vector<1x32xf32> to vector<16x32xf32>
    %174 = arith.addf %172, %173 : vector<16x32xf32>
    %175 = arith.addf %166, %174 : vector<16x32xf32>
    %cst_50 = arith.constant dense<0.000000e+00> : vector<16xf32>
    %176 = vector.multi_reduction <add>, %175, %cst_50 [1] : vector<16x32xf32> to vector<16xf32>
    %177 = vector.shape_cast %176 : vector<16xf32> to vector<16x1xf32>
    %cst_51 = arith.constant 3.125000e-02 : f32
    %178 = vector.broadcast %cst_51 : f32 to vector<16x1xf32>
    %179 = arith.mulf %177, %178 : vector<16x1xf32>
    %180 = arith.mulf %175, %175 : vector<16x32xf32>
    %cst_52 = arith.constant dense<0.000000e+00> : vector<16xf32>
    %181 = vector.multi_reduction <add>, %180, %cst_52 [1] : vector<16x32xf32> to vector<16xf32>
    %182 = vector.shape_cast %181 : vector<16xf32> to vector<16x1xf32>
    %cst_53 = arith.constant 3.125000e-02 : f32
    %183 = vector.broadcast %cst_53 : f32 to vector<16x1xf32>
    %184 = arith.mulf %182, %183 : vector<16x1xf32>
    %185 = arith.mulf %179, %179 : vector<16x1xf32>
    %186 = arith.subf %184, %185 : vector<16x1xf32>
    %187 = vector.broadcast %179 : vector<16x1xf32> to vector<16x32xf32>
    %188 = arith.subf %175, %187 : vector<16x32xf32>
    %cst_54 = arith.constant 9.99999974E-6 : f32
    %189 = vector.broadcast %cst_54 : f32 to vector<16x1xf32>
    %190 = arith.addf %186, %189 : vector<16x1xf32>
    %191 = math.rsqrt %190 : vector<16x1xf32>
    %192 = vector.broadcast %191 : vector<16x1xf32> to vector<16x32xf32>
    %193 = arith.mulf %188, %192 : vector<16x32xf32>
    %194 = vector.broadcast %114 : vector<1x32xf32> to vector<16x32xf32>
    %195 = arith.mulf %193, %194 : vector<16x32xf32>
    %196 = vector.broadcast %115 : vector<1x32xf32> to vector<16x32xf32>
    %197 = arith.addf %195, %196 : vector<16x32xf32>
    %c352 = arith.constant 352 : index
    %c0_55 = arith.constant 0 : index
    %198 = vector.load %arg1[%c352, %c0_55] : memref<392x96xf32, #tpu.memory_space<vmem>>, vector<32x16xf32>
    %c384 = arith.constant 384 : index
    %c0_56 = arith.constant 0 : index
    %199 = vector.load %arg1[%c384, %c0_56] : memref<392x96xf32, #tpu.memory_space<vmem>>, vector<1x16xf32>
    %cst_57 = arith.constant dense<0.000000e+00> : vector<16x16xf32>
    %200 = tpu.matmul %197, %198, %cst_57 {dimension_numbers = #tpu.dot_dimension_numbers<[1], [0], [0], [1], [0, 0, 1, 1], [], []>} : vector<16x32xf32>, vector<32x16xf32>, vector<16x16xf32> -> vector<16x16xf32>
    %cst_58 = arith.constant dense<0.000000e+00> : vector<2x16xf32>
    %201 = tpu.matmul %4, %200, %cst_58 {dimension_numbers = #tpu.dot_dimension_numbers<[1], [0], [0], [1], [0, 0, 1, 1], [], []>} : vector<2x16xf32>, vector<16x16xf32>, vector<2x16xf32> -> vector<2x16xf32>
    %202 = vector.broadcast %199 : vector<1x16xf32> to vector<2x16xf32>
    %203 = arith.addf %201, %202 : vector<2x16xf32>
    %c0_59 = arith.constant 0 : index
    %c0_60 = arith.constant 0 : index
    %204 = vector.load %arg3[%c0_59, %c0_60] : memref<2x16xf32, #tpu.memory_space<vmem>>, vector<2x16xf32>
    tpu.vector_store %arg3[%c0_59, %c0_60], %203 {strides = array<i32>} : memref<2x16xf32, #tpu.memory_space<vmem>>, vector<2x16xf32>,
    return
  }
}

</mosaic_0001>

<llo_original>
// kernel: transformer_forward.1
$region0: #{transformer_forward.1}
  #allocation0 [shape = 'u32[]', space=smem, size = 0x4, offset = 0x4, fixed_abs, tag = 'smem constant byte address 0x4 - core index']
  #allocation1 [shape = 'u32[144,128]{1,0:T(1,128)}', space=vmem, size = 0x12000, scoped, tag = 'internal scratch']
  %s0 = inlined_call_operand.vmem [shape: f32[16,16], index: 0, kind: input, shape index: {}]
  %s1 = inlined_call_operand.vmem [shape: f32[392,96], index: 1, kind: input, shape index: {}]
  %s2 = inlined_call_operand.vmem [shape: f32[152,32], index: 2, kind: input, shape index: {}]
  %s3 = inlined_call_operand.hbm [shape: f32[2,16], index: 3, kind: output, shape index: {}]
  %s4 = sld [smem:[#allocation0]]
  $region22: #{transformer_forward.1} parent=0
    _
  %s6 = ssub.s32 1, %s4
  %s7 = scalar_select 0, %s6, %s4
  $region1: #{transformer_forward.1} parent=0
    #allocation2 [shape = 'u8[1024]{0}', space=vmem, size = 0x400, scoped, tag = 'output window, operand 0, single buffered']
    #allocation3 [shape = 's32[1]{0}', space=sflag, size = 0x4, scoped, tag = 'scoped memory for transformer_forward.1']
    %8 = vsyncpa [#allocation3], 0
    // Predicated region
    $region2: #{transformer_forward.1} parent=1 // pred_check
      _
    $region3: #{transformer_forward.1} parent=1 // pred_check_branch
      %10 = sbr.rel (0) target = $region5
    $region4: #{transformer_forward.1} parent=1 // pred_region
      _
    $region5: #{transformer_forward.1} parent=1 // pred_fallthru
      _
    // Predicated region
    $region6: #{transformer_forward.1} parent=1 // pred_check
      _
    $region7: #{transformer_forward.1} parent=1 // pred_check_branch
      %12 = sbr.rel (0) target = $region9
    $region8: #{transformer_forward.1} parent=1 // pred_region
      _
    $region9: #{transformer_forward.1} parent=1 // pred_fallthru
      _
    // Predicated region
    $region10: #{transformer_forward.1} parent=1 // pred_check
      _
    $region11: #{transformer_forward.1} parent=1 // pred_check_branch
      %14 = sbr.rel (0) target = $region13
    $region12: #{transformer_forward.1} parent=1 // pred_region
      _
    $region13: #{transformer_forward.1} parent=1 // pred_fallthru
      _
    %v15 = vld [vmem:[%s0] sm:$0xff]
    %v16 = vld [vmem:[%s0 + $0x8] sm:$0xff]
    %v17 = vld [vmem:[%s2] sm:$0xff]
    %v18 = vld [vmem:[%s2 + $0x8] sm:$0xff]
    %v19 = vld [vmem:[%s2 + $0x10] sm:$0xff]
    %v20 = vld [vmem:[%s2 + $0x18] sm:$0xff]
    %v21 = vld [vmem:[%s2 + $0x20] sm:$0xff]
    %v22 = vld [vmem:[%s2 + $0x28] sm:$0xff]
    %v23 = vld [vmem:[%s2 + $0x30] sm:$0xff]
    %v24 = vld [vmem:[%s2 + $0x38] sm:$0xff]
    %v25 = vld [vmem:[%s2 + $0x40] sm:$0xff]
    %v26 = vld [vmem:[%s2 + $0x48] sm:$0xff]
    %v27 = vld [vmem:[%s2 + $0x50] sm:$0xff]
    %v28 = vld [vmem:[%s2 + $0x58] sm:$0xff]
    %v29 = vld [vmem:[%s2 + $0x60] sm:$0xff]
    %v30 = vld [vmem:[%s2 + $0x68] sm:$0xff]
    %v31 = vld [vmem:[%s2 + $0x70] sm:$0xff]
    %v32 = vld [vmem:[%s2 + $0x78] sm:$0xff]
    %v33 = vld [vmem:[%s2 + $0x80] sm:$0xff]
    %v34 = vld [vmem:[%s2 + $0x88] sm:$0xff]
    %v35 = vld [vmem:[%s2 + $0x90] sm:$0x3]
    %v36 = vld [vmem:[%s1] sm:$0xff]
    %v37 = vld [vmem:[%s1 + $0x8] sm:$0xff]
    %vm38 = vcmask 130048
    %v40 = vsel %vm38, %v15, 0
    %v43 = vsel %vm38, %v16, 0
    %45 = vmatprep.subr.mxu0 0.0
    %46 = vmatpush1.msra.mxu0 0.0
    %47 = vmatprep.subr.mxu0 0.0
    %48 = vmatpush1.msra.mxu0 0.0
    %49 = vmatprep.subr.mxu0 0.0
    %50 = vmatpush1.msra.mxu0 0.0
    %51 = vmatprep.subr.mxu0 0.0
    %52 = vmatpush1.msra.mxu0 0.0
    %53 = vmatprep.subr.mxu0 0.0
    %54 = vmatpush1.msra.mxu0 0.0
    %55 = vmatprep.subr.mxu0 0.0
    %56 = vmatpush1.msra.mxu0 0.0
    %57 = vmatprep.subr.mxu0 0.0
    %58 = vmatpush1.msra.mxu0 0.0
    %59 = vmatprep.subr.mxu0 0.0
    %60 = vmatpush1.msra.mxu0 0.0
    %61 = vmatprep.subr.mxu0 0.0
    %62 = vmatpush1.msra.mxu0 0.0
    %63 = vmatprep.subr.mxu0 0.0
    %64 = vmatpush1.msra.mxu0 0.0
    %65 = vmatprep.subr.mxu0 0.0
    %66 = vmatpush1.msra.mxu0 0.0
    %67 = vmatprep.subr.mxu0 0.0
    %68 = vmatpush1.msra.mxu0 0.0
    %69 = vmatprep.subr.mxu0 0.0
    %70 = vmatpush1.msra.mxu0 0.0
    %71 = vmatprep.subr.mxu0 0.0
    %72 = vmatpush1.msra.mxu0 0.0
    %73 = vmatprep.subr.mxu0 0.0
    %74 = vmatpush1.msra.mxu0 %v37
    %75 = vmatprep.subr.mxu0 0.0
    %76 = vmatpush1.msra.mxu0 %v36
    %77 = vmatprep.subr.mxu0 0.0
    %78 = vmatpush2.msra.mxu0 0.0
    %79 = vmatprep.subr.mxu0 0.0
    %80 = vmatpush2.msra.mxu0 0.0
    %81 = vmatprep.subr.mxu0 0.0
    %82 = vmatpush2.msra.mxu0 0.0
    %83 = vmatprep.subr.mxu0 0.0
    %84 = vmatpush2.msra.mxu0 0.0
    %85 = vmatprep.subr.mxu0 0.0
    %86 = vmatpush2.msra.mxu0 0.0
    %87 = vmatprep.subr.mxu0 0.0
    %88 = vmatpush2.msra.mxu0 0.0
    %89 = vmatprep.subr.mxu0 0.0
    %90 = vmatpush2.msra.mxu0 0.0
    %91 = vmatprep.subr.mxu0 0.0
    %92 = vmatpush2.msra.mxu0 0.0
    %93 = vmatprep.subr.mxu0 0.0
    %94 = vmatpush2.msra.mxu0 0.0
    %95 = vmatprep.subr.mxu0 0.0
    %96 = vmatpush2.msra.mxu0 0.0
    %97 = vmatprep.subr.mxu0 0.0
    %98 = vmatpush2.msra.mxu0 0.0
    %99 = vmatprep.subr.mxu0 0.0
    %100 = vmatpush2.msra.mxu0 0.0
    %101 = vmatprep.subr.mxu0 0.0
    %102 = vmatpush2.msra.mxu0 0.0
    %103 = vmatprep.subr.mxu0 0.0
    %104 = vmatpush2.msra.mxu0 0.0
    %105 = vmatprep.subr.mxu0 0.0
    %106 = vmatpush2.msra.mxu0 0.0
    %107 = vmatprep.subr.mxu0 0.0
    %108 = vmatpush2.msra.mxu0 0.0
    %109 = vmatprep.mubr.f32.mxu0 0.0
    %110 = vmatmul.mubr.f32.gmra.mxu0 %v40
    %v111 = vpop.f32.mrf.mxu0
    %v112 = vadd.f32 %v17, %v111
    %v113 = vpop.f32.mrf.mxu0
    %114 = vmatprep.mubr.f32.mxu0 0.0
    %115 = vmatmul.mubr.f32.gmra.mxu0 %v43
    %v116 = vpop.f32.mrf.mxu0
    %v117 = vadd.f32 %v18, %v116
    %v118 = vpop.f32.mrf.mxu0
    %119 = vdwg.mxu0
    %v120 = vld [vmem:[%s1 + $0x10] sm:$0xff]
    %v121 = vld [vmem:[%s1 + $0x18] sm:$0xff]
    %v122 = vld [vmem:[%s1 + $0x20] sm:$0xff]
    %v123 = vld [vmem:[%s1 + $0x28] sm:$0xff]
    %v124 = vld [vmem:[%s1 + $0x30] sm:$0xff]
    %v125 = vld [vmem:[%s1 + $0x38] sm:$0xff]
    %v126 = vld [vmem:[%s1 + $0x40] sm:$0xff]
    %v127 = vld [vmem:[%s1 + $0x48] sm:$0xff]
    %v128 = vld [vmem:[%s1 + $0x50] sm:$0xff]
    %v129 = vld [vmem:[%s1 + $0x58] sm:$0xff]
    %v130 = vld [vmem:[%s1 + $0x60] sm:$0xff]
    %v131 = vld [vmem:[%s1 + $0x68] sm:$0xff]
    %v132 = vld [vmem:[%s1 + $0x70] sm:$0xff]
    %v133 = vld [vmem:[%s1 + $0x78] sm:$0xff]
    %v134 = vld [vmem:[%s1 + $0x80] sm:$0xff]
    %v135 = vld [vmem:[%s1 + $0x88] sm:$0xff]
    %v136 = vld [vmem:[%s1 + $0x90] sm:$0xff]
    %v137 = vld [vmem:[%s1 + $0x98] sm:$0xff]
    %v138 = vld [vmem:[%s1 + $0xa0] sm:$0xff]
    %v139 = vld [vmem:[%s1 + $0xa8] sm:$0xff]
    %v140 = vld [vmem:[%s1 + $0xb0] sm:$0xff]
    %v141 = vlaneseq
    %v142 = vshrl.u32 %v141, 7
    %v143 = vsub.s32 0, %v142
    %v144 = vrot.slane %v124, %v143
    %vm145 = vcmask 261120
    %v147 = vsel %vm145, %v112, 0
    %v150 = vsel %vm145, %v117, 0
    %152 = vmatprep.subr.mxu0 0.0
    %153 = vmatpush1.msra.mxu0 0.0
    %154 = vmatprep.subr.mxu0 0.0
    %155 = vmatpush1.msra.mxu0 0.0
    %156 = vmatprep.subr.mxu0 0.0
    %157 = vmatpush1.msra.mxu0 0.0
    %158 = vmatprep.subr.mxu0 0.0
    %159 = vmatpush1.msra.mxu0 0.0
    %160 = vmatprep.subr.mxu0 0.0
    %161 = vmatpush1.msra.mxu0 0.0
    %162 = vmatprep.subr.mxu0 0.0
    %163 = vmatpush1.msra.mxu0 0.0
    %164 = vmatprep.subr.mxu0 0.0
    %165 = vmatpush1.msra.mxu0 0.0
    %166 = vmatprep.subr.mxu0 0.0
    %167 = vmatpush1.msra.mxu0 0.0
    %168 = vmatprep.subr.mxu0 0.0
    %169 = vmatpush1.msra.mxu0 0.0
    %170 = vmatprep.subr.mxu0 0.0
    %171 = vmatpush1.msra.mxu0 0.0
    %172 = vmatprep.subr.mxu0 0.0
    %173 = vmatpush1.msra.mxu0 0.0
    %174 = vmatprep.subr.mxu0 0.0
    %175 = vmatpush1.msra.mxu0 0.0
    %176 = vmatprep.subr.mxu0 0.0
    %177 = vmatpush1.msra.mxu0 %v123
    %178 = vmatprep.subr.mxu0 0.0
    %179 = vmatpush1.msra.mxu0 %v122
    %180 = vmatprep.subr.mxu0 0.0
    %181 = vmatpush1.msra.mxu0 %v121
    %182 = vmatprep.subr.mxu0 0.0
    %183 = vmatpush1.msra.mxu0 %v120
    %184 = vmatprep.subr.mxu0 0.0
    %185 = vmatpush2.msra.mxu0 0.0
    %186 = vmatprep.subr.mxu0 0.0
    %187 = vmatpush2.msra.mxu0 0.0
    %188 = vmatprep.subr.mxu0 0.0
    %189 = vmatpush2.msra.mxu0 0.0
    %190 = vmatprep.subr.mxu0 0.0
    %191 = vmatpush2.msra.mxu0 0.0
    %192 = vmatprep.subr.mxu0 0.0
    %193 = vmatpush2.msra.mxu0 0.0
    %194 = vmatprep.subr.mxu0 0.0
    %195 = vmatpush2.msra.mxu0 0.0
    %196 = vmatprep.subr.mxu0 0.0
    %197 = vmatpush2.msra.mxu0 0.0
    %198 = vmatprep.subr.mxu0 0.0
    %199 = vmatpush2.msra.mxu0 0.0
    %200 = vmatprep.subr.mxu0 0.0
    %201 = vmatpush2.msra.mxu0 0.0
    %202 = vmatprep.subr.mxu0 0.0
    %203 = vmatpush2.msra.mxu0 0.0
    %204 = vmatprep.subr.mxu0 0.0
    %205 = vmatpush2.msra.mxu0 0.0
    %206 = vmatprep.subr.mxu0 0.0
    %207 = vmatpush2.msra.mxu0 0.0
    %208 = vmatprep.subr.mxu0 0.0
    %209 = vmatpush2.msra.mxu0 0.0
    %210 = vmatprep.subr.mxu0 0.0
    %211 = vmatpush2.msra.mxu0 0.0
    %212 = vmatprep.subr.mxu0 0.0
    %213 = vmatpush2.msra.mxu0 0.0
    %214 = vmatprep.subr.mxu0 0.0
    %215 = vmatpush2.msra.mxu0 0.0
    %216 = vmatprep.mubr.f32.mxu0 0.0
    %217 = vmatmul.mubr.f32.gmra.mxu0 %v147
    %v218 = vpop.f32.mrf.mxu0
    %v219 = vadd.f32 %v144, %v218
    %v220 = vpop.f32.mrf.mxu0
    %221 = vmatprep.mubr.f32.mxu0 0.0
    %222 = vmatmul.mubr.f32.gmra.mxu0 %v150
    %v223 = vpop.f32.mrf.mxu0
    %v224 = vadd.f32 %v144, %v223
    %v225 = vpop.f32.mrf.mxu0
    %226 = vdwg.mxu0
    %v227 = vmul.f32 %v219, %v19
    %v228 = vmul.f32 %v224, %v20
    %v229 = vmul.f32 %v219, %v21
    %v230 = vmul.f32 %v224, %v22
    %v231 = vmul.f32 %v219, %v23
    %v232 = vmul.f32 %v224, %v24
    %v233 = vmul.f32 %v219, %v25
    %v234 = vmul.f32 %v224, %v26
    %237 = vrot.lane.b32.xlu0 %v219, 96
    %v238 = vpop.permute.xlu0 %237
    %239 = vrot.lane.b32.xlu0 %v224, 96
    %v240 = vpop.permute.xlu0 %239
    %v242 = vsel %vm145, %v227, 0
    %v245 = vsel %vm145, %v228, 0
    %v248 = vsel %vm145, %v229, 0
    %v251 = vsel %vm145, %v230, 0
    %v254 = vsel %vm145, %v231, 0
    %v257 = vsel %vm145, %v232, 0
    %v260 = vsel %vm145, %v233, 0
    %v263 = vsel %vm145, %v234, 0
    %v265 = vsel %vm145, %v238, 0
    %v267 = vsel %vm145, %v240, 0
    %269 = vmatprep.subr.mxu0 0.0
    %270 = vmatpush1.xpose.msra.mxu0 0.0
    %271 = vmatprep.subr.mxu0 0.0
    %272 = vmatpush1.xpose.msra.mxu0 0.0
    %273 = vmatprep.subr.mxu0 0.0
    %274 = vmatpush1.xpose.msra.mxu0 0.0
    %275 = vmatprep.subr.mxu0 0.0
    %276 = vmatpush1.xpose.msra.mxu0 0.0
    %277 = vmatprep.subr.mxu0 0.0
    %278 = vmatpush1.xpose.msra.mxu0 0.0
    %279 = vmatprep.subr.mxu0 0.0
    %280 = vmatpush1.xpose.msra.mxu0 0.0
    %281 = vmatprep.subr.mxu0 0.0
    %282 = vmatpush1.xpose.msra.mxu0 0.0
    %283 = vmatprep.subr.mxu0 0.0
    %284 = vmatpush1.xpose.msra.mxu0 0.0
    %285 = vmatprep.subr.mxu0 0.0
    %286 = vmatpush1.xpose.msra.mxu0 0.0
    %287 = vmatprep.subr.mxu0 0.0
    %288 = vmatpush1.xpose.msra.mxu0 0.0
    %289 = vmatprep.subr.mxu0 0.0
    %290 = vmatpush1.xpose.msra.mxu0 0.0
    %291 = vmatprep.subr.mxu0 0.0
    %292 = vmatpush1.xpose.msra.mxu0 0.0
    %293 = vmatprep.subr.mxu0 0.0
    %294 = vmatpush1.xpose.msra.mxu0 0.0
    %295 = vmatprep.subr.mxu0 0.0
    %296 = vmatpush1.xpose.msra.mxu0 0.0
    %297 = vmatprep.subr.mxu0 0.0
    %298 = vmatpush1.xpose.msra.mxu0 %v267
    %299 = vmatprep.subr.mxu0 0.0
    %300 = vmatpush1.xpose.msra.mxu0 %v265
    %301 = vmatprep.subr.mxu0 0.0
    %302 = vmatpush2.xpose.msra.mxu0 0.0
    %303 = vmatprep.subr.mxu0 0.0
    %304 = vmatpush2.xpose.msra.mxu0 0.0
    %305 = vmatprep.subr.mxu0 0.0
    %306 = vmatpush2.xpose.msra.mxu0 0.0
    %307 = vmatprep.subr.mxu0 0.0
    %308 = vmatpush2.xpose.msra.mxu0 0.0
    %309 = vmatprep.subr.mxu0 0.0
    %310 = vmatpush2.xpose.msra.mxu0 0.0
    %311 = vmatprep.subr.mxu0 0.0
    %312 = vmatpush2.xpose.msra.mxu0 0.0
    %313 = vmatprep.subr.mxu0 0.0
    %314 = vmatpush2.xpose.msra.mxu0 0.0
    %315 = vmatprep.subr.mxu0 0.0
    %316 = vmatpush2.xpose.msra.mxu0 0.0
    %317 = vmatprep.subr.mxu0 0.0
    %318 = vmatpush2.xpose.msra.mxu0 0.0
    %319 = vmatprep.subr.mxu0 0.0
    %320 = vmatpush2.xpose.msra.mxu0 0.0
    %321 = vmatprep.subr.mxu0 0.0
    %322 = vmatpush2.xpose.msra.mxu0 0.0
    %323 = vmatprep.subr.mxu0 0.0
    %324 = vmatpush2.xpose.msra.mxu0 0.0
    %325 = vmatprep.subr.mxu0 0.0
    %326 = vmatpush2.xpose.msra.mxu0 0.0
    %327 = vmatprep.subr.mxu0 0.0
    %328 = vmatpush2.xpose.msra.mxu0 0.0
    %329 = vmatprep.subr.mxu0 0.0
    %330 = vmatpush2.xpose.msra.mxu0 0.0
    %331 = vmatprep.subr.mxu0 0.0
    %332 = vmatpush2.xpose.msra.mxu0 0.0
    %333 = vmatprep.mubr.f32.mxu0 0.0
    %334 = vmatmul.mubr.f32.gmra.mxu0 %v242
    %v335 = vpop.f32.mrf.mxu0
    %v336 = vadd.f32 %v27, %v335
    %v337 = vpop.f32.mrf.mxu0
    %338 = vmatprep.mubr.f32.mxu0 0.0
    %339 = vmatmul.mubr.f32.gmra.mxu0 %v245
    %v340 = vpop.f32.mrf.mxu0
    %v341 = vadd.f32 %v28, %v340
    %v342 = vpop.f32.mrf.mxu0
    %343 = vmatprep.mubr.f32.mxu0 0.0
    %344 = vmatmul.mubr.f32.gmra.mxu0 %v248
    %v345 = vpop.f32.mrf.mxu0
    %v346 = vadd.f32 %v29, %v345
    %v347 = vpop.f32.mrf.mxu0
    %348 = vmatprep.mubr.f32.mxu0 0.0
    %349 = vmatmul.mubr.f32.gmra.mxu0 %v251
    %v350 = vpop.f32.mrf.mxu0
    %v351 = vadd.f32 %v30, %v350
    %v352 = vpop.f32.mrf.mxu0
    %353 = vmatprep.mubr.f32.mxu0 0.0
    %354 = vmatmul.mubr.f32.gmra.mxu0 %v254
    %v355 = vpop.f32.mrf.mxu0
    %v356 = vadd.f32 %v31, %v355
    %v357 = vpop.f32.mrf.mxu0
    %358 = vmatprep.mubr.f32.mxu0 0.0
    %359 = vmatmul.mubr.f32.gmra.mxu0 %v257
    %v360 = vpop.f32.mrf.mxu0
    %v361 = vadd.f32 %v32, %v360
    %v362 = vpop.f32.mrf.mxu0
    %363 = vmatprep.mubr.f32.mxu0 0.0
    %364 = vmatmul.mubr.f32.gmra.mxu0 %v260
    %v365 = vpop.f32.mrf.mxu0
    %v366 = vadd.f32 %v33, %v365
    %v367 = vpop.f32.mrf.mxu0
    %368 = vmatprep.mubr.f32.mxu0 0.0
    %369 = vmatmul.mubr.f32.gmra.mxu0 %v263
    %v370 = vpop.f32.mrf.mxu0
    %v371 = vadd.f32 %v34, %v370
    %v372 = vpop.f32.mrf.mxu0
    %373 = vdwg.mxu0
    %v374 = vmul.f32 %v336, 1.442695
    %v375 = vpow.pop %v374
    %v376 = vmul.f32 %v341, 1.442695
    %v377 = vpow.pop %v376
    %v378 = vmul.f32 %v346, 1.442695
    %v379 = vpow.pop %v378
    %v380 = vmul.f32 %v351, 1.442695
    %v381 = vpow.pop %v380
    %v382 = vmul.f32 %v356, 1.442695
    %v383 = vpow.pop %v382
    %v384 = vmul.f32 %v361, 1.442695
    %v385 = vpow.pop %v384
    %v386 = vmul.f32 %v366, 1.442695
    %v387 = vpow.pop %v386
    %v388 = vmul.f32 %v371, 1.442695
    %v389 = vpow.pop %v388
    %v390 = vsel %vm38, %v375, 0.0
    %391 = vadd.xlane.f32.xlu0 %v390
    %v392 = vpop.xlane.xlu0 %391
    %v393 = vsel %vm38, %v377, 0.0
    %394 = vadd.xlane.f32.xlu0 %v393
    %v395 = vpop.xlane.xlu0 %394
    %v396 = vsel %vm38, %v379, 0.0
    %397 = vadd.xlane.f32.xlu0 %v396
    %v398 = vpop.xlane.xlu0 %397
    %v399 = vsel %vm38, %v381, 0.0
    %400 = vadd.xlane.f32.xlu0 %v399
    %v401 = vpop.xlane.xlu0 %400
    %v402 = vsel %vm38, %v383, 0.0
    %403 = vadd.xlane.f32.xlu0 %v402
    %v404 = vpop.xlane.xlu0 %403
    %v405 = vsel %vm38, %v385, 0.0
    %406 = vadd.xlane.f32.xlu0 %v405
    %v407 = vpop.xlane.xlu0 %406
    %v408 = vsel %vm38, %v387, 0.0
    %409 = vadd.xlane.f32.xlu0 %v408
    %v410 = vpop.xlane.xlu0 %409
    %v411 = vsel %vm38, %v389, 0.0
    %412 = vadd.xlane.f32.xlu0 %v411
    %v413 = vpop.xlane.xlu0 %412
    %v414 = vrcp.pop %v392
    %v415 = vrcp.pop %v395
    %v416 = vrcp.pop %v398
    %v417 = vrcp.pop %v401
    %v418 = vrcp.pop %v404
    %v419 = vrcp.pop %v407
    %v420 = vrcp.pop %v410
    %v421 = vrcp.pop %v413
    %v422 = vmul.f32 %v375, %v414
    %v423 = vmul.f32 %v377, %v415
    %v424 = vmul.f32 %v379, %v416
    %v425 = vmul.f32 %v381, %v417
    %v426 = vmul.f32 %v383, %v418
    %v427 = vmul.f32 %v385, %v419
    %v428 = vmul.f32 %v387, %v420
    %v429 = vmul.f32 %v389, %v421
    %430 = vrot.lane.b32.xlu0 %v219, 64
    %v431 = vpop.permute.xlu0 %430
    %432 = vrot.lane.b32.xlu0 %v224, 64
    %v433 = vpop.permute.xlu0 %432
    %v437 = vsel %vm38, %v422, 0
    %v440 = vsel %vm38, %v423, 0
    %v443 = vsel %vm38, %v424, 0
    %v446 = vsel %vm38, %v425, 0
    %v449 = vsel %vm38, %v426, 0
    %v452 = vsel %vm38, %v427, 0
    %v455 = vsel %vm38, %v428, 0
    %v458 = vsel %vm38, %v429, 0
    %460 = vmatprep.subr.mxu0 0.0
    %461 = vmatpush1.msra.mxu0 0.0
    %462 = vmatprep.subr.mxu0 0.0
    %463 = vmatpush1.msra.mxu0 0.0
    %464 = vmatprep.subr.mxu0 0.0
    %465 = vmatpush1.msra.mxu0 0.0
    %466 = vmatprep.subr.mxu0 0.0
    %467 = vmatpush1.msra.mxu0 0.0
    %468 = vmatprep.subr.mxu0 0.0
    %469 = vmatpush1.msra.mxu0 0.0
    %470 = vmatprep.subr.mxu0 0.0
    %471 = vmatpush1.msra.mxu0 0.0
    %472 = vmatprep.subr.mxu0 0.0
    %473 = vmatpush1.msra.mxu0 0.0
    %474 = vmatprep.subr.mxu0 0.0
    %475 = vmatpush1.msra.mxu0 0.0
    %476 = vmatprep.subr.mxu0 0.0
    %477 = vmatpush1.msra.mxu0 0.0
    %478 = vmatprep.subr.mxu0 0.0
    %479 = vmatpush1.msra.mxu0 0.0
    %480 = vmatprep.subr.mxu0 0.0
    %481 = vmatpush1.msra.mxu0 0.0
    %482 = vmatprep.subr.mxu0 0.0
    %483 = vmatpush1.msra.mxu0 0.0
    %484 = vmatprep.subr.mxu0 0.0
    %485 = vmatpush1.msra.mxu0 0.0
    %486 = vmatprep.subr.mxu0 0.0
    %487 = vmatpush1.msra.mxu0 0.0
    %488 = vmatprep.subr.mxu0 0.0
    %489 = vmatpush1.msra.mxu0 %v433
    %490 = vmatprep.subr.mxu0 0.0
    %491 = vmatpush1.msra.mxu0 %v431
    %492 = vmatprep.subr.mxu0 0.0
    %493 = vmatpush2.msra.mxu0 0.0
    %494 = vmatprep.subr.mxu0 0.0
    %495 = vmatpush2.msra.mxu0 0.0
    %496 = vmatprep.subr.mxu0 0.0
    %497 = vmatpush2.msra.mxu0 0.0
    %498 = vmatprep.subr.mxu0 0.0
    %499 = vmatpush2.msra.mxu0 0.0
    %500 = vmatprep.subr.mxu0 0.0
    %501 = vmatpush2.msra.mxu0 0.0
    %502 = vmatprep.subr.mxu0 0.0
    %503 = vmatpush2.msra.mxu0 0.0
    %504 = vmatprep.subr.mxu0 0.0
    %505 = vmatpush2.msra.mxu0 0.0
    %506 = vmatprep.subr.mxu0 0.0
    %507 = vmatpush2.msra.mxu0 0.0
    %508 = vmatprep.subr.mxu0 0.0
    %509 = vmatpush2.msra.mxu0 0.0
    %510 = vmatprep.subr.mxu0 0.0
    %511 = vmatpush2.msra.mxu0 0.0
    %512 = vmatprep.subr.mxu0 0.0
    %513 = vmatpush2.msra.mxu0 0.0
    %514 = vmatprep.subr.mxu0 0.0
    %515 = vmatpush2.msra.mxu0 0.0
    %516 = vmatprep.subr.mxu0 0.0
    %517 = vmatpush2.msra.mxu0 0.0
    %518 = vmatprep.subr.mxu0 0.0
    %519 = vmatpush2.msra.mxu0 0.0
    %520 = vmatprep.subr.mxu0 0.0
    %521 = vmatpush2.msra.mxu0 0.0
    %522 = vmatprep.subr.mxu0 0.0
    %523 = vmatpush2.msra.mxu0 0.0
    %524 = vmatprep.mubr.f32.mxu0 0.0
    %525 = vmatmul.mubr.f32.gmra.mxu0 %v437
    %v526 = vpop.f32.mrf.mxu0
    %v527 = vadd.f32 0.0, %v526
    %v528 = vpop.f32.mrf.mxu0
    %529 = vmatprep.mubr.f32.mxu0 0.0
    %530 = vmatmul.mubr.f32.gmra.mxu0 %v440
    %v531 = vpop.f32.mrf.mxu0
    %v532 = vadd.f32 0.0, %v531
    %v533 = vpop.f32.mrf.mxu0
    %534 = vmatprep.mubr.f32.mxu0 0.0
    %535 = vmatmul.mubr.f32.gmra.mxu0 %v443
    %v536 = vpop.f32.mrf.mxu0
    %v537 = vadd.f32 0.0, %v536
    %v538 = vpop.f32.mrf.mxu0
    %539 = vmatprep.mubr.f32.mxu0 0.0
    %540 = vmatmul.mubr.f32.gmra.mxu0 %v446
    %v541 = vpop.f32.mrf.mxu0
    %v542 = vadd.f32 0.0, %v541
    %v543 = vpop.f32.mrf.mxu0
    %544 = vmatprep.mubr.f32.mxu0 0.0
    %545 = vmatmul.mubr.f32.gmra.mxu0 %v449
    %v546 = vpop.f32.mrf.mxu0
    %v547 = vadd.f32 0.0, %v546
    %v548 = vpop.f32.mrf.mxu0
    %549 = vmatprep.mubr.f32.mxu0 0.0
    %550 = vmatmul.mubr.f32.gmra.mxu0 %v452
    %v551 = vpop.f32.mrf.mxu0
    %v552 = vadd.f32 0.0, %v551
    %v553 = vpop.f32.mrf.mxu0
    %554 = vmatprep.mubr.f32.mxu0 0.0
    %555 = vmatmul.mubr.f32.gmra.mxu0 %v455
    %v556 = vpop.f32.mrf.mxu0
    %v557 = vadd.f32 0.0, %v556
    %v558 = vpop.f32.mrf.mxu0
    %559 = vmatprep.mubr.f32.mxu0 0.0
    %560 = vmatmul.mubr.f32.gmra.mxu0 %v458
    %v561 = vpop.f32.mrf.mxu0
    %v562 = vadd.f32 0.0, %v561
    %v563 = vpop.f32.mrf.mxu0
    %564 = vdwg.mxu0
    %v565 = vmul.f32 %v527, %v19
    %v566 = vmul.f32 %v532, %v20
    %v567 = vmul.f32 %v537, %v21
    %v568 = vmul.f32 %v542, %v22
    %v569 = vmul.f32 %v547, %v23
    %v570 = vmul.f32 %v552, %v24
    %v571 = vmul.f32 %v557, %v25
    %v572 = vmul.f32 %v562, %v26
    %v573 = vadd.f32 %v565, %v567
    %v574 = vadd.f32 %v566, %v568
    %v575 = vadd.f32 %v573, %v569
    %v576 = vadd.f32 %v574, %v570
    %v577 = vadd.f32 %v575, %v571
    %v578 = vadd.f32 %v576, %v572
    %v579 = vlaneseq
    %v580 = vshrl.u32 %v579, 7
    %v581 = vsub.s32 1, %v580
    %v582 = vrot.slane %v124, %v581
    %v584 = vsel %vm145, %v577, 0
    %v587 = vsel %vm145, %v578, 0
    %589 = vmatprep.subr.mxu0 0.0
    %590 = vmatpush1.msra.mxu0 0.0
    %591 = vmatprep.subr.mxu0 0.0
    %592 = vmatpush1.msra.mxu0 0.0
    %593 = vmatprep.subr.mxu0 0.0
    %594 = vmatpush1.msra.mxu0 0.0
    %595 = vmatprep.subr.mxu0 0.0
    %596 = vmatpush1.msra.mxu0 0.0
    %597 = vmatprep.subr.mxu0 0.0
    %598 = vmatpush1.msra.mxu0 0.0
    %599 = vmatprep.subr.mxu0 0.0
    %600 = vmatpush1.msra.mxu0 0.0
    %601 = vmatprep.subr.mxu0 0.0
    %602 = vmatpush1.msra.mxu0 0.0
    %603 = vmatprep.subr.mxu0 0.0
    %604 = vmatpush1.msra.mxu0 0.0
    %605 = vmatprep.subr.mxu0 0.0
    %606 = vmatpush1.msra.mxu0 0.0
    %607 = vmatprep.subr.mxu0 0.0
    %608 = vmatpush1.msra.mxu0 0.0
    %609 = vmatprep.subr.mxu0 0.0
    %610 = vmatpush1.msra.mxu0 0.0
    %611 = vmatprep.subr.mxu0 0.0
    %612 = vmatpush1.msra.mxu0 0.0
    %613 = vmatprep.subr.mxu0 0.0
    %614 = vmatpush1.msra.mxu0 %v128
    %615 = vmatprep.subr.mxu0 0.0
    %616 = vmatpush1.msra.mxu0 %v127
    %617 = vmatprep.subr.mxu0 0.0
    %618 = vmatpush1.msra.mxu0 %v126
    %619 = vmatprep.subr.mxu0 0.0
    %620 = vmatpush1.msra.mxu0 %v125
    %621 = vmatprep.subr.mxu0 0.0
    %622 = vmatpush2.msra.mxu0 0.0
    %623 = vmatprep.subr.mxu0 0.0
    %624 = vmatpush2.msra.mxu0 0.0
    %625 = vmatprep.subr.mxu0 0.0
    %626 = vmatpush2.msra.mxu0 0.0
    %627 = vmatprep.subr.mxu0 0.0
    %628 = vmatpush2.msra.mxu0 0.0
    %629 = vmatprep.subr.mxu0 0.0
    %630 = vmatpush2.msra.mxu0 0.0
    %631 = vmatprep.subr.mxu0 0.0
    %632 = vmatpush2.msra.mxu0 0.0
    %633 = vmatprep.subr.mxu0 0.0
    %634 = vmatpush2.msra.mxu0 0.0
    %635 = vmatprep.subr.mxu0 0.0
    %636 = vmatpush2.msra.mxu0 0.0
    %637 = vmatprep.subr.mxu0 0.0
    %638 = vmatpush2.msra.mxu0 0.0
    %639 = vmatprep.subr.mxu0 0.0
    %640 = vmatpush2.msra.mxu0 0.0
    %641 = vmatprep.subr.mxu0 0.0
    %642 = vmatpush2.msra.mxu0 0.0
    %643 = vmatprep.subr.mxu0 0.0
    %644 = vmatpush2.msra.mxu0 0.0
    %645 = vmatprep.subr.mxu0 0.0
    %646 = vmatpush2.msra.mxu0 0.0
    %647 = vmatprep.subr.mxu0 0.0
    %648 = vmatpush2.msra.mxu0 0.0
    %649 = vmatprep.subr.mxu0 0.0
    %650 = vmatpush2.msra.mxu0 0.0
    %651 = vmatprep.subr.mxu0 0.0
    %652 = vmatpush2.msra.mxu0 0.0
    %653 = vmatprep.mubr.f32.mxu0 0.0
    %654 = vmatmul.mubr.f32.gmra.mxu0 %v584
    %v655 = vpop.f32.mrf.mxu0
    %v656 = vadd.f32 %v582, %v655
    %v657 = vpop.f32.mrf.mxu0
    %658 = vmatprep.mubr.f32.mxu0 0.0
    %659 = vmatmul.mubr.f32.gmra.mxu0 %v587
    %v660 = vpop.f32.mrf.mxu0
    %v661 = vadd.f32 %v582, %v660
    %v662 = vpop.f32.mrf.mxu0
    %663 = vdwg.mxu0
    %v664 = vadd.f32 %v112, %v656
    %v665 = vadd.f32 %v117, %v661
    %v666 = vsel %vm145, %v664, 0.0
    %667 = vadd.xlane.f32.xlu0 %v666
    %v668 = vpop.xlane.xlu0 %667
    %v669 = vsel %vm145, %v665, 0.0
    %670 = vadd.xlane.f32.xlu0 %v669
    %v671 = vpop.xlane.xlu0 %670
    %v672 = vmul.f32 %v668, 0.03125
    %v673 = vmul.f32 %v671, 0.03125
    %v674 = vmul.f32 %v664, %v664
    %v675 = vmul.f32 %v665, %v665
    %v676 = vsel %vm145, %v674, 0.0
    %677 = vadd.xlane.f32.xlu0 %v676
    %v678 = vpop.xlane.xlu0 %677
    %v679 = vsel %vm145, %v675, 0.0
    %680 = vadd.xlane.f32.xlu0 %v679
    %v681 = vpop.xlane.xlu0 %680
    %v682 = vmul.f32 %v678, 0.03125
    %v683 = vmul.f32 %v681, 0.03125
    %v684 = vmul.f32 %v672, %v672
    %v685 = vmul.f32 %v673, %v673
    %v686 = vsub.f32 %v682, %v684
    %v687 = vsub.f32 %v683, %v685
    %v688 = vsub.f32 %v664, %v672
    %v689 = vsub.f32 %v665, %v673
    %v690 = vadd.f32 %v686, 1e-05
    %v691 = vadd.f32 %v687, 1e-05
    %v692 = vrsqrt.pop %v690
    %v693 = vrsqrt.pop %v691
    %v694 = vmul.f32 %v688, %v692
    %v695 = vmul.f32 %v689, %v693
    %v696 = vlaneseq
    %v697 = vshrl.u32 %v696, 7
    %v698 = vsub.s32 2, %v697
    %v699 = vrot.slane %v124, %v698
    %v700 = vmul.f32 %v694, %v699
    %v701 = vmul.f32 %v695, %v699
    %v702 = vlaneseq
    %v703 = vshrl.u32 %v702, 7
    %v704 = vsub.s32 3, %v703
    %v705 = vrot.slane %v124, %v704
    %v706 = vadd.f32 %v700, %v705
    %v707 = vadd.f32 %v701, %v705
    %v708 = vlaneseq
    %v709 = vshrl.u32 %v708, 7
    %v710 = vsub.s32 4, %v709
    %v711 = vrot.slane %v124, %v710
    %v713 = vsel %vm145, %v706, 0
    %v716 = vsel %vm145, %v707, 0
    %718 = vmatprep.subr.mxu0 0.0
    %719 = vmatpush1.msra.mxu0 0.0
    %720 = vmatprep.subr.mxu0 0.0
    %721 = vmatpush1.msra.mxu0 0.0
    %722 = vmatprep.subr.mxu0 0.0
    %723 = vmatpush1.msra.mxu0 0.0
    %724 = vmatprep.subr.mxu0 0.0
    %725 = vmatpush1.msra.mxu0 0.0
    %726 = vmatprep.subr.mxu0 0.0
    %727 = vmatpush1.msra.mxu0 0.0
    %728 = vmatprep.subr.mxu0 0.0
    %729 = vmatpush1.msra.mxu0 0.0
    %730 = vmatprep.subr.mxu0 0.0
    %731 = vmatpush1.msra.mxu0 0.0
    %732 = vmatprep.subr.mxu0 0.0
    %733 = vmatpush1.msra.mxu0 0.0
    %734 = vmatprep.subr.mxu0 0.0
    %735 = vmatpush1.msra.mxu0 0.0
    %736 = vmatprep.subr.mxu0 0.0
    %737 = vmatpush1.msra.mxu0 0.0
    %738 = vmatprep.subr.mxu0 0.0
    %739 = vmatpush1.msra.mxu0 0.0
    %740 = vmatprep.subr.mxu0 0.0
    %741 = vmatpush1.msra.mxu0 0.0
    %742 = vmatprep.subr.mxu0 0.0
    %743 = vmatpush1.msra.mxu0 %v132
    %744 = vmatprep.subr.mxu0 0.0
    %745 = vmatpush1.msra.mxu0 %v131
    %746 = vmatprep.subr.mxu0 0.0
    %747 = vmatpush1.msra.mxu0 %v130
    %748 = vmatprep.subr.mxu0 0.0
    %749 = vmatpush1.msra.mxu0 %v129
    %750 = vmatprep.subr.mxu0 0.0
    %751 = vmatpush2.msra.mxu0 0.0
    %752 = vmatprep.subr.mxu0 0.0
    %753 = vmatpush2.msra.mxu0 0.0
    %754 = vmatprep.subr.mxu0 0.0
    %755 = vmatpush2.msra.mxu0 0.0
    %756 = vmatprep.subr.mxu0 0.0
    %757 = vmatpush2.msra.mxu0 0.0
    %758 = vmatprep.subr.mxu0 0.0
    %759 = vmatpush2.msra.mxu0 0.0
    %760 = vmatprep.subr.mxu0 0.0
    %761 = vmatpush2.msra.mxu0 0.0
    %762 = vmatprep.subr.mxu0 0.0
    %763 = vmatpush2.msra.mxu0 0.0
    %764 = vmatprep.subr.mxu0 0.0
    %765 = vmatpush2.msra.mxu0 0.0
    %766 = vmatprep.subr.mxu0 0.0
    %767 = vmatpush2.msra.mxu0 0.0
    %768 = vmatprep.subr.mxu0 0.0
    %769 = vmatpush2.msra.mxu0 0.0
    %770 = vmatprep.subr.mxu0 0.0
    %771 = vmatpush2.msra.mxu0 0.0
    %772 = vmatprep.subr.mxu0 0.0
    %773 = vmatpush2.msra.mxu0 0.0
    %774 = vmatprep.subr.mxu0 0.0
    %775 = vmatpush2.msra.mxu0 0.0
    %776 = vmatprep.subr.mxu0 0.0
    %777 = vmatpush2.msra.mxu0 0.0
    %778 = vmatprep.subr.mxu0 0.0
    %779 = vmatpush2.msra.mxu0 0.0
    %780 = vmatprep.subr.mxu0 0.0
    %781 = vmatpush2.msra.mxu0 0.0
    %782 = vmatprep.mubr.f32.mxu0 0.0
    %783 = vmatmul.mubr.f32.gmra.mxu0 %v713
    %v784 = vpop.f32.mrf.mxu0
    %v785 = vadd.f32 %v711, %v784
    %v786 = vpop.f32.mrf.mxu0
    %787 = vmatprep.mubr.f32.mxu0 0.0
    %788 = vmatmul.mubr.f32.gmra.mxu0 %v716
    %v789 = vpop.f32.mrf.mxu0
    %v790 = vadd.f32 %v711, %v789
    %v791 = vpop.f32.mrf.mxu0
    %792 = vdwg.mxu0
    %v793 = vmax.f32 %v785, 0.0
    %v794 = vmax.f32 %v790, 0.0
    %v795 = vlaneseq
    %v796 = vshrl.u32 %v795, 7
    %v797 = vsub.s32 5, %v796
    %v798 = vrot.slane %v124, %v797
    %vm799 = vcmask 523264
    %v801 = vsel %vm799, %v793, 0
    %v804 = vsel %vm799, %v794, 0
    %806 = vmatprep.subr.mxu0 0.0
    %807 = vmatpush1.msra.mxu0 0.0
    %808 = vmatprep.subr.mxu0 0.0
    %809 = vmatpush1.msra.mxu0 0.0
    %810 = vmatprep.subr.mxu0 0.0
    %811 = vmatpush1.msra.mxu0 0.0
    %812 = vmatprep.subr.mxu0 0.0
    %813 = vmatpush1.msra.mxu0 0.0
    %814 = vmatprep.subr.mxu0 0.0
    %815 = vmatpush1.msra.mxu0 0.0
    %816 = vmatprep.subr.mxu0 0.0
    %817 = vmatpush1.msra.mxu0 0.0
    %818 = vmatprep.subr.mxu0 0.0
    %819 = vmatpush1.msra.mxu0 0.0
    %820 = vmatprep.subr.mxu0 0.0
    %821 = vmatpush1.msra.mxu0 0.0
    %822 = vmatprep.subr.mxu0 0.0
    %823 = vmatpush1.msra.mxu0 %v140
    %824 = vmatprep.subr.mxu0 0.0
    %825 = vmatpush1.msra.mxu0 %v139
    %826 = vmatprep.subr.mxu0 0.0
    %827 = vmatpush1.msra.mxu0 %v138
    %828 = vmatprep.subr.mxu0 0.0
    %829 = vmatpush1.msra.mxu0 %v137
    %830 = vmatprep.subr.mxu0 0.0
    %831 = vmatpush1.msra.mxu0 %v136
    %832 = vmatprep.subr.mxu0 0.0
    %833 = vmatpush1.msra.mxu0 %v135
    %834 = vmatprep.subr.mxu0 0.0
    %835 = vmatpush1.msra.mxu0 %v134
    %836 = vmatprep.subr.mxu0 0.0
    %837 = vmatpush1.msra.mxu0 %v133
    %838 = vmatprep.subr.mxu0 0.0
    %839 = vmatpush2.msra.mxu0 0.0
    %840 = vmatprep.subr.mxu0 0.0
    %841 = vmatpush2.msra.mxu0 0.0
    %842 = vmatprep.subr.mxu0 0.0
    %843 = vmatpush2.msra.mxu0 0.0
    %844 = vmatprep.subr.mxu0 0.0
    %845 = vmatpush2.msra.mxu0 0.0
    %846 = vmatprep.subr.mxu0 0.0
    %847 = vmatpush2.msra.mxu0 0.0
    %848 = vmatprep.subr.mxu0 0.0
    %849 = vmatpush2.msra.mxu0 0.0
    %850 = vmatprep.subr.mxu0 0.0
    %851 = vmatpush2.msra.mxu0 0.0
    %852 = vmatprep.subr.mxu0 0.0
    %853 = vmatpush2.msra.mxu0 0.0
    %854 = vmatprep.subr.mxu0 0.0
    %855 = vmatpush2.msra.mxu0 0.0
    %856 = vmatprep.subr.mxu0 0.0
    %857 = vmatpush2.msra.mxu0 0.0
    %858 = vmatprep.subr.mxu0 0.0
    %859 = vmatpush2.msra.mxu0 0.0
    %860 = vmatprep.subr.mxu0 0.0
    %861 = vmatpush2.msra.mxu0 0.0
    %862 = vmatprep.subr.mxu0 0.0
    %863 = vmatpush2.msra.mxu0 0.0
    %864 = vmatprep.subr.mxu0 0.0
    %865 = vmatpush2.msra.mxu0 0.0
    %866 = vmatprep.subr.mxu0 0.0
    %867 = vmatpush2.msra.mxu0 0.0
    %868 = vmatprep.subr.mxu0 0.0
    %869 = vmatpush2.msra.mxu0 0.0
    %870 = vmatprep.mubr.f32.mxu0 0.0
    %871 = vmatmul.mubr.f32.gmra.mxu0 %v801
    %v872 = vpop.f32.mrf.mxu0
    %v873 = vadd.f32 %v798, %v872
    %v874 = vpop.f32.mrf.mxu0
    %875 = vmatprep.mubr.f32.mxu0 0.0
    %876 = vmatmul.mubr.f32.gmra.mxu0 %v804
    %v877 = vpop.f32.mrf.mxu0
    %v878 = vadd.f32 %v798, %v877
    %v879 = vpop.f32.mrf.mxu0
    %880 = vdwg.mxu0
    %v881 = vadd.f32 %v706, %v873
    %v882 = vadd.f32 %v707, %v878
    %v883 = vsel %vm145, %v881, 0.0
    %884 = vadd.xlane.f32.xlu0 %v883
    %v885 = vpop.xlane.xlu0 %884
    %v886 = vsel %vm145, %v882, 0.0
    %887 = vadd.xlane.f32.xlu0 %v886
    %v888 = vpop.xlane.xlu0 %887
    %v889 = vmul.f32 %v885, 0.03125
    %v890 = vmul.f32 %v888, 0.03125
    %v891 = vmul.f32 %v881, %v881
    %v892 = vmul.f32 %v882, %v882
    %v893 = vsel %vm145, %v891, 0.0
    %894 = vadd.xlane.f32.xlu0 %v893
    %v895 = vpop.xlane.xlu0 %894
    %v896 = vsel %vm145, %v892, 0.0
    %897 = vadd.xlane.f32.xlu0 %v896
    %v898 = vpop.xlane.xlu0 %897
    %v899 = vmul.f32 %v895, 0.03125
    %v900 = vmul.f32 %v898, 0.03125
    %v901 = vmul.f32 %v889, %v889
    %v902 = vmul.f32 %v890, %v890
    %v903 = vsub.f32 %v899, %v901
    %v904 = vsub.f32 %v900, %v902
    %v905 = vsub.f32 %v881, %v889
    %v906 = vsub.f32 %v882, %v890
    %v907 = vadd.f32 %v903, 1e-05
    %v908 = vadd.f32 %v904, 1e-05
    %v909 = vrsqrt.pop %v907
    %v910 = vrsqrt.pop %v908
    %v911 = vmul.f32 %v905, %v909
    %v912 = vmul.f32 %v906, %v910
    %v913 = vlaneseq
    %v914 = vshrl.u32 %v913, 7
    %v915 = vsub.s32 6, %v914
    %v916 = vrot.slane %v124, %v915
    %v917 = vmul.f32 %v911, %v916
    %v918 = vmul.f32 %v912, %v916
    %v919 = vlaneseq
    %v920 = vshrl.u32 %v919, 7
    %v921 = vsub.s32 7, %v920
    %v922 = vrot.slane %v124, %v921
    %v923 = vadd.f32 %v917, %v922
    %v924 = vadd.f32 %v918, %v922
    %v925 = vld [vmem:[%s1 + $0xb8] sm:$0xff]
    %v926 = vld [vmem:[%s1 + $0xc0] sm:$0xff]
    %v927 = vld [vmem:[%s1 + $0xc8] sm:$0xff]
    %v928 = vld [vmem:[%s1 + $0xd0] sm:$0xff]
    %v929 = vld [vmem:[%s1 + $0xd8] sm:$0xff]
    %v930 = vld [vmem:[%s1 + $0xe0] sm:$0xff]
    %v931 = vld [vmem:[%s1 + $0xe8] sm:$0xff]
    %v932 = vld [vmem:[%s1 + $0xf0] sm:$0xff]
    %v933 = vld [vmem:[%s1 + $0xf8] sm:$0xff]
    %v934 = vld [vmem:[%s1 + $0x100] sm:$0xff]
    %v935 = vld [vmem:[%s1 + $0x108] sm:$0xff]
    %v936 = vld [vmem:[%s1 + $0x110] sm:$0xff]
    %v937 = vld [vmem:[%s1 + $0x118] sm:$0xff]
    %v938 = vld [vmem:[%s1 + $0x120] sm:$0xff]
    %v939 = vld [vmem:[%s1 + $0x128] sm:$0xff]
    %v940 = vld [vmem:[%s1 + $0x130] sm:$0xff]
    %v941 = vld [vmem:[%s1 + $0x138] sm:$0xff]
    %v942 = vld [vmem:[%s1 + $0x140] sm:$0xff]
    %v943 = vld [vmem:[%s1 + $0x148] sm:$0xff]
    %v944 = vld [vmem:[%s1 + $0x150] sm:$0xff]
    %v945 = vld [vmem:[%s1 + $0x158] sm:$0xff]
    %v946 = vlaneseq
    %v947 = vshrl.u32 %v946, 7
    %v948 = vsub.s32 0, %v947
    %v949 = vrot.slane %v929, %v948
    %v951 = vsel %vm145, %v923, 0
    %v954 = vsel %vm145, %v924, 0
    %956 = vmatprep.subr.mxu0 0.0
    %957 = vmatpush1.msra.mxu0 0.0
    %958 = vmatprep.subr.mxu0 0.0
    %959 = vmatpush1.msra.mxu0 0.0
    %960 = vmatprep.subr.mxu0 0.0
    %961 = vmatpush1.msra.mxu0 0.0
    %962 = vmatprep.subr.mxu0 0.0
    %963 = vmatpush1.msra.mxu0 0.0
    %964 = vmatprep.subr.mxu0 0.0
    %965 = vmatpush1.msra.mxu0 0.0
    %966 = vmatprep.subr.mxu0 0.0
    %967 = vmatpush1.msra.mxu0 0.0
    %968 = vmatprep.subr.mxu0 0.0
    %969 = vmatpush1.msra.mxu0 0.0
    %970 = vmatprep.subr.mxu0 0.0
    %971 = vmatpush1.msra.mxu0 0.0
    %972 = vmatprep.subr.mxu0 0.0
    %973 = vmatpush1.msra.mxu0 0.0
    %974 = vmatprep.subr.mxu0 0.0
    %975 = vmatpush1.msra.mxu0 0.0
    %976 = vmatprep.subr.mxu0 0.0
    %977 = vmatpush1.msra.mxu0 0.0
    %978 = vmatprep.subr.mxu0 0.0
    %979 = vmatpush1.msra.mxu0 0.0
    %980 = vmatprep.subr.mxu0 0.0
    %981 = vmatpush1.msra.mxu0 %v928
    %982 = vmatprep.subr.mxu0 0.0
    %983 = vmatpush1.msra.mxu0 %v927
    %984 = vmatprep.subr.mxu0 0.0
    %985 = vmatpush1.msra.mxu0 %v926
    %986 = vmatprep.subr.mxu0 0.0
    %987 = vmatpush1.msra.mxu0 %v925
    %988 = vmatprep.subr.mxu0 0.0
    %989 = vmatpush2.msra.mxu0 0.0
    %990 = vmatprep.subr.mxu0 0.0
    %991 = vmatpush2.msra.mxu0 0.0
    %992 = vmatprep.subr.mxu0 0.0
    %993 = vmatpush2.msra.mxu0 0.0
    %994 = vmatprep.subr.mxu0 0.0
    %995 = vmatpush2.msra.mxu0 0.0
    %996 = vmatprep.subr.mxu0 0.0
    %997 = vmatpush2.msra.mxu0 0.0
    %998 = vmatprep.subr.mxu0 0.0
    %999 = vmatpush2.msra.mxu0 0.0
    %1000 = vmatprep.subr.mxu0 0.0
    %1001 = vmatpush2.msra.mxu0 0.0
    %1002 = vmatprep.subr.mxu0 0.0
    %1003 = vmatpush2.msra.mxu0 0.0
    %1004 = vmatprep.subr.mxu0 0.0
    %1005 = vmatpush2.msra.mxu0 0.0
    %1006 = vmatprep.subr.mxu0 0.0
    %1007 = vmatpush2.msra.mxu0 0.0
    %1008 = vmatprep.subr.mxu0 0.0
    %1009 = vmatpush2.msra.mxu0 0.0
    %1010 = vmatprep.subr.mxu0 0.0
    %1011 = vmatpush2.msra.mxu0 0.0
    %1012 = vmatprep.subr.mxu0 0.0
    %1013 = vmatpush2.msra.mxu0 0.0
    %1014 = vmatprep.subr.mxu0 0.0
    %1015 = vmatpush2.msra.mxu0 0.0
    %1016 = vmatprep.subr.mxu0 0.0
    %1017 = vmatpush2.msra.mxu0 0.0
    %1018 = vmatprep.subr.mxu0 0.0
    %1019 = vmatpush2.msra.mxu0 0.0
    %1020 = vmatprep.mubr.f32.mxu0 0.0
    %1021 = vmatmul.mubr.f32.gmra.mxu0 %v951
    %v1022 = vpop.f32.mrf.mxu0
    %v1023 = vadd.f32 %v949, %v1022
    %v1024 = vpop.f32.mrf.mxu0
    %1025 = vmatprep.mubr.f32.mxu0 0.0
    %1026 = vmatmul.mubr.f32.gmra.mxu0 %v954
    %v1027 = vpop.f32.mrf.mxu0
    %v1028 = vadd.f32 %v949, %v1027
    %v1029 = vpop.f32.mrf.mxu0
    %1030 = vdwg.mxu0
    %v1031 = vmul.f32 %v1023, %v19
    %v1032 = vmul.f32 %v1028, %v20
    %v1033 = vmul.f32 %v1023, %v21
    %v1034 = vmul.f32 %v1028, %v22
    %v1035 = vmul.f32 %v1023, %v23
    %v1036 = vmul.f32 %v1028, %v24
    %v1037 = vmul.f32 %v1023, %v25
    %v1038 = vmul.f32 %v1028, %v26
    %1041 = vrot.lane.b32.xlu0 %v1023, 96
    %v1042 = vpop.permute.xlu0 %1041
    %1043 = vrot.lane.b32.xlu0 %v1028, 96
    %v1044 = vpop.permute.xlu0 %1043
    %v1046 = vsel %vm145, %v1031, 0
    %v1049 = vsel %vm145, %v1032, 0
    %v1052 = vsel %vm145, %v1033, 0
    %v1055 = vsel %vm145, %v1034, 0
    %v1058 = vsel %vm145, %v1035, 0
    %v1061 = vsel %vm145, %v1036, 0
    %v1064 = vsel %vm145, %v1037, 0
    %v1067 = vsel %vm145, %v1038, 0
    %v1069 = vsel %vm145, %v1042, 0
    %v1071 = vsel %vm145, %v1044, 0
    %1073 = vmatprep.subr.mxu0 0.0
    %1074 = vmatpush1.xpose.msra.mxu0 0.0
    %1075 = vmatprep.subr.mxu0 0.0
    %1076 = vmatpush1.xpose.msra.mxu0 0.0
    %1077 = vmatprep.subr.mxu0 0.0
    %1078 = vmatpush1.xpose.msra.mxu0 0.0
    %1079 = vmatprep.subr.mxu0 0.0
    %1080 = vmatpush1.xpose.msra.mxu0 0.0
    %1081 = vmatprep.subr.mxu0 0.0
    %1082 = vmatpush1.xpose.msra.mxu0 0.0
    %1083 = vmatprep.subr.mxu0 0.0
    %1084 = vmatpush1.xpose.msra.mxu0 0.0
    %1085 = vmatprep.subr.mxu0 0.0
    %1086 = vmatpush1.xpose.msra.mxu0 0.0
    %1087 = vmatprep.subr.mxu0 0.0
    %1088 = vmatpush1.xpose.msra.mxu0 0.0
    %1089 = vmatprep.subr.mxu0 0.0
    %1090 = vmatpush1.xpose.msra.mxu0 0.0
    %1091 = vmatprep.subr.mxu0 0.0
    %1092 = vmatpush1.xpose.msra.mxu0 0.0
    %1093 = vmatprep.subr.mxu0 0.0
    %1094 = vmatpush1.xpose.msra.mxu0 0.0
    %1095 = vmatprep.subr.mxu0 0.0
    %1096 = vmatpush1.xpose.msra.mxu0 0.0
    %1097 = vmatprep.subr.mxu0 0.0
    %1098 = vmatpush1.xpose.msra.mxu0 0.0
    %1099 = vmatprep.subr.mxu0 0.0
    %1100 = vmatpush1.xpose.msra.mxu0 0.0
    %1101 = vmatprep.subr.mxu0 0.0
    %1102 = vmatpush1.xpose.msra.mxu0 %v1071
    %1103 = vmatprep.subr.mxu0 0.0
    %1104 = vmatpush1.xpose.msra.mxu0 %v1069
    %1105 = vmatprep.subr.mxu0 0.0
    %1106 = vmatpush2.xpose.msra.mxu0 0.0
    %1107 = vmatprep.subr.mxu0 0.0
    %1108 = vmatpush2.xpose.msra.mxu0 0.0
    %1109 = vmatprep.subr.mxu0 0.0
    %1110 = vmatpush2.xpose.msra.mxu0 0.0
    %1111 = vmatprep.subr.mxu0 0.0
    %1112 = vmatpush2.xpose.msra.mxu0 0.0
    %1113 = vmatprep.subr.mxu0 0.0
    %1114 = vmatpush2.xpose.msra.mxu0 0.0
    %1115 = vmatprep.subr.mxu0 0.0
    %1116 = vmatpush2.xpose.msra.mxu0 0.0
    %1117 = vmatprep.subr.mxu0 0.0
    %1118 = vmatpush2.xpose.msra.mxu0 0.0
    %1119 = vmatprep.subr.mxu0 0.0
    %1120 = vmatpush2.xpose.msra.mxu0 0.0
    %1121 = vmatprep.subr.mxu0 0.0
    %1122 = vmatpush2.xpose.msra.mxu0 0.0
    %1123 = vmatprep.subr.mxu0 0.0
    %1124 = vmatpush2.xpose.msra.mxu0 0.0
    %1125 = vmatprep.subr.mxu0 0.0
    %1126 = vmatpush2.xpose.msra.mxu0 0.0
    %1127 = vmatprep.subr.mxu0 0.0
    %1128 = vmatpush2.xpose.msra.mxu0 0.0
    %1129 = vmatprep.subr.mxu0 0.0
    %1130 = vmatpush2.xpose.msra.mxu0 0.0
    %1131 = vmatprep.subr.mxu0 0.0
    %1132 = vmatpush2.xpose.msra.mxu0 0.0
    %1133 = vmatprep.subr.mxu0 0.0
    %1134 = vmatpush2.xpose.msra.mxu0 0.0
    %1135 = vmatprep.subr.mxu0 0.0
    %1136 = vmatpush2.xpose.msra.mxu0 0.0
    %1137 = vmatprep.mubr.f32.mxu0 0.0
    %1138 = vmatmul.mubr.f32.gmra.mxu0 %v1046
    %v1139 = vpop.f32.mrf.mxu0
    %v1140 = vadd.f32 %v27, %v1139
    %v1141 = vpop.f32.mrf.mxu0
    %1142 = vmatprep.mubr.f32.mxu0 0.0
    %1143 = vmatmul.mubr.f32.gmra.mxu0 %v1049
    %v1144 = vpop.f32.mrf.mxu0
    %v1145 = vadd.f32 %v28, %v1144
    %v1146 = vpop.f32.mrf.mxu0
    %1147 = vmatprep.mubr.f32.mxu0 0.0
    %1148 = vmatmul.mubr.f32.gmra.mxu0 %v1052
    %v1149 = vpop.f32.mrf.mxu0
    %v1150 = vadd.f32 %v29, %v1149
    %v1151 = vpop.f32.mrf.mxu0
    %1152 = vmatprep.mubr.f32.mxu0 0.0
    %1153 = vmatmul.mubr.f32.gmra.mxu0 %v1055
    %v1154 = vpop.f32.mrf.mxu0
    %v1155 = vadd.f32 %v30, %v1154
    %v1156 = vpop.f32.mrf.mxu0
    %1157 = vmatprep.mubr.f32.mxu0 0.0
    %1158 = vmatmul.mubr.f32.gmra.mxu0 %v1058
    %v1159 = vpop.f32.mrf.mxu0
    %v1160 = vadd.f32 %v31, %v1159
    %v1161 = vpop.f32.mrf.mxu0
    %1162 = vmatprep.mubr.f32.mxu0 0.0
    %1163 = vmatmul.mubr.f32.gmra.mxu0 %v1061
    %v1164 = vpop.f32.mrf.mxu0
    %v1165 = vadd.f32 %v32, %v1164
    %v1166 = vpop.f32.mrf.mxu0
    %1167 = vmatprep.mubr.f32.mxu0 0.0
    %1168 = vmatmul.mubr.f32.gmra.mxu0 %v1064
    %v1169 = vpop.f32.mrf.mxu0
    %v1170 = vadd.f32 %v33, %v1169
    %v1171 = vpop.f32.mrf.mxu0
    %1172 = vmatprep.mubr.f32.mxu0 0.0
    %1173 = vmatmul.mubr.f32.gmra.mxu0 %v1067
    %v1174 = vpop.f32.mrf.mxu0
    %v1175 = vadd.f32 %v34, %v1174
    %v1176 = vpop.f32.mrf.mxu0
    %1177 = vdwg.mxu0
    %v1178 = vmul.f32 %v1140, 1.442695
    %v1179 = vpow.pop %v1178
    %v1180 = vmul.f32 %v1145, 1.442695
    %v1181 = vpow.pop %v1180
    %v1182 = vmul.f32 %v1150, 1.442695
    %v1183 = vpow.pop %v1182
    %v1184 = vmul.f32 %v1155, 1.442695
    %v1185 = vpow.pop %v1184
    %v1186 = vmul.f32 %v1160, 1.442695
    %v1187 = vpow.pop %v1186
    %v1188 = vmul.f32 %v1165, 1.442695
    %v1189 = vpow.pop %v1188
    %v1190 = vmul.f32 %v1170, 1.442695
    %v1191 = vpow.pop %v1190
    %v1192 = vmul.f32 %v1175, 1.442695
    %v1193 = vpow.pop %v1192
    %v1194 = vsel %vm38, %v1179, 0.0
    %1195 = vadd.xlane.f32.xlu0 %v1194
    %v1196 = vpop.xlane.xlu0 %1195
    %v1197 = vsel %vm38, %v1181, 0.0
    %1198 = vadd.xlane.f32.xlu0 %v1197
    %v1199 = vpop.xlane.xlu0 %1198
    %v1200 = vsel %vm38, %v1183, 0.0
    %1201 = vadd.xlane.f32.xlu0 %v1200
    %v1202 = vpop.xlane.xlu0 %1201
    %v1203 = vsel %vm38, %v1185, 0.0
    %1204 = vadd.xlane.f32.xlu0 %v1203
    %v1205 = vpop.xlane.xlu0 %1204
    %v1206 = vsel %vm38, %v1187, 0.0
    %1207 = vadd.xlane.f32.xlu0 %v1206
    %v1208 = vpop.xlane.xlu0 %1207
    %v1209 = vsel %vm38, %v1189, 0.0
    %1210 = vadd.xlane.f32.xlu0 %v1209
    %v1211 = vpop.xlane.xlu0 %1210
    %v1212 = vsel %vm38, %v1191, 0.0
    %1213 = vadd.xlane.f32.xlu0 %v1212
    %v1214 = vpop.xlane.xlu0 %1213
    %v1215 = vsel %vm38, %v1193, 0.0
    %1216 = vadd.xlane.f32.xlu0 %v1215
    %v1217 = vpop.xlane.xlu0 %1216
    %v1218 = vrcp.pop %v1196
    %v1219 = vrcp.pop %v1199
    %v1220 = vrcp.pop %v1202
    %v1221 = vrcp.pop %v1205
    %v1222 = vrcp.pop %v1208
    %v1223 = vrcp.pop %v1211
    %v1224 = vrcp.pop %v1214
    %v1225 = vrcp.pop %v1217
    %v1226 = vmul.f32 %v1179, %v1218
    %v1227 = vmul.f32 %v1181, %v1219
    %v1228 = vmul.f32 %v1183, %v1220
    %v1229 = vmul.f32 %v1185, %v1221
    %v1230 = vmul.f32 %v1187, %v1222
    %v1231 = vmul.f32 %v1189, %v1223
    %v1232 = vmul.f32 %v1191, %v1224
    %v1233 = vmul.f32 %v1193, %v1225
    %1234 = vrot.lane.b32.xlu0 %v1023, 64
    %v1235 = vpop.permute.xlu0 %1234
    %1236 = vrot.lane.b32.xlu0 %v1028, 64
    %v1237 = vpop.permute.xlu0 %1236
    %v1241 = vsel %vm38, %v1226, 0
    %v1244 = vsel %vm38, %v1227, 0
    %v1247 = vsel %vm38, %v1228, 0
    %v1250 = vsel %vm38, %v1229, 0
    %v1253 = vsel %vm38, %v1230, 0
    %v1256 = vsel %vm38, %v1231, 0
    %v1259 = vsel %vm38, %v1232, 0
    %v1262 = vsel %vm38, %v1233, 0
    %1264 = vmatprep.subr.mxu0 0.0
    %1265 = vmatpush1.msra.mxu0 0.0
    %1266 = vmatprep.subr.mxu0 0.0
    %1267 = vmatpush1.msra.mxu0 0.0
    %1268 = vmatprep.subr.mxu0 0.0
    %1269 = vmatpush1.msra.mxu0 0.0
    %1270 = vmatprep.subr.mxu0 0.0
    %1271 = vmatpush1.msra.mxu0 0.0
    %1272 = vmatprep.subr.mxu0 0.0
    %1273 = vmatpush1.msra.mxu0 0.0
    %1274 = vmatprep.subr.mxu0 0.0
    %1275 = vmatpush1.msra.mxu0 0.0
    %1276 = vmatprep.subr.mxu0 0.0
    %1277 = vmatpush1.msra.mxu0 0.0
    %1278 = vmatprep.subr.mxu0 0.0
    %1279 = vmatpush1.msra.mxu0 0.0
    %1280 = vmatprep.subr.mxu0 0.0
    %1281 = vmatpush1.msra.mxu0 0.0
    %1282 = vmatprep.subr.mxu0 0.0
    %1283 = vmatpush1.msra.mxu0 0.0
    %1284 = vmatprep.subr.mxu0 0.0
    %1285 = vmatpush1.msra.mxu0 0.0
    %1286 = vmatprep.subr.mxu0 0.0
    %1287 = vmatpush1.msra.mxu0 0.0
    %1288 = vmatprep.subr.mxu0 0.0
    %1289 = vmatpush1.msra.mxu0 0.0
    %1290 = vmatprep.subr.mxu0 0.0
    %1291 = vmatpush1.msra.mxu0 0.0
    %1292 = vmatprep.subr.mxu0 0.0
    %1293 = vmatpush1.msra.mxu0 %v1237
    %1294 = vmatprep.subr.mxu0 0.0
    %1295 = vmatpush1.msra.mxu0 %v1235
    %1296 = vmatprep.subr.mxu0 0.0
    %1297 = vmatpush2.msra.mxu0 0.0
    %1298 = vmatprep.subr.mxu0 0.0
    %1299 = vmatpush2.msra.mxu0 0.0
    %1300 = vmatprep.subr.mxu0 0.0
    %1301 = vmatpush2.msra.mxu0 0.0
    %1302 = vmatprep.subr.mxu0 0.0
    %1303 = vmatpush2.msra.mxu0 0.0
    %1304 = vmatprep.subr.mxu0 0.0
    %1305 = vmatpush2.msra.mxu0 0.0
    %1306 = vmatprep.subr.mxu0 0.0
    %1307 = vmatpush2.msra.mxu0 0.0
    %1308 = vmatprep.subr.mxu0 0.0
    %1309 = vmatpush2.msra.mxu0 0.0
    %1310 = vmatprep.subr.mxu0 0.0
    %1311 = vmatpush2.msra.mxu0 0.0
    %1312 = vmatprep.subr.mxu0 0.0
    %1313 = vmatpush2.msra.mxu0 0.0
    %1314 = vmatprep.subr.mxu0 0.0
    %1315 = vmatpush2.msra.mxu0 0.0
    %1316 = vmatprep.subr.mxu0 0.0
    %1317 = vmatpush2.msra.mxu0 0.0
    %1318 = vmatprep.subr.mxu0 0.0
    %1319 = vmatpush2.msra.mxu0 0.0
    %1320 = vmatprep.subr.mxu0 0.0
    %1321 = vmatpush2.msra.mxu0 0.0
    %1322 = vmatprep.subr.mxu0 0.0
    %1323 = vmatpush2.msra.mxu0 0.0
    %1324 = vmatprep.subr.mxu0 0.0
    %1325 = vmatpush2.msra.mxu0 0.0
    %1326 = vmatprep.subr.mxu0 0.0
    %1327 = vmatpush2.msra.mxu0 0.0
    %1328 = vmatprep.mubr.f32.mxu0 0.0
    %1329 = vmatmul.mubr.f32.gmra.mxu0 %v1241
    %v1330 = vpop.f32.mrf.mxu0
    %v1331 = vadd.f32 0.0, %v1330
    %v1332 = vpop.f32.mrf.mxu0
    %1333 = vmatprep.mubr.f32.mxu0 0.0
    %1334 = vmatmul.mubr.f32.gmra.mxu0 %v1244
    %v1335 = vpop.f32.mrf.mxu0
    %v1336 = vadd.f32 0.0, %v1335
    %v1337 = vpop.f32.mrf.mxu0
    %1338 = vmatprep.mubr.f32.mxu0 0.0
    %1339 = vmatmul.mubr.f32.gmra.mxu0 %v1247
    %v1340 = vpop.f32.mrf.mxu0
    %v1341 = vadd.f32 0.0, %v1340
    %v1342 = vpop.f32.mrf.mxu0
    %1343 = vmatprep.mubr.f32.mxu0 0.0
    %1344 = vmatmul.mubr.f32.gmra.mxu0 %v1250
    %v1345 = vpop.f32.mrf.mxu0
    %v1346 = vadd.f32 0.0, %v1345
    %v1347 = vpop.f32.mrf.mxu0
    %1348 = vmatprep.mubr.f32.mxu0 0.0
    %1349 = vmatmul.mubr.f32.gmra.mxu0 %v1253
    %v1350 = vpop.f32.mrf.mxu0
    %v1351 = vadd.f32 0.0, %v1350
    %v1352 = vpop.f32.mrf.mxu0
    %1353 = vmatprep.mubr.f32.mxu0 0.0
    %1354 = vmatmul.mubr.f32.gmra.mxu0 %v1256
    %v1355 = vpop.f32.mrf.mxu0
    %v1356 = vadd.f32 0.0, %v1355
    %v1357 = vpop.f32.mrf.mxu0
    %1358 = vmatprep.mubr.f32.mxu0 0.0
    %1359 = vmatmul.mubr.f32.gmra.mxu0 %v1259
    %v1360 = vpop.f32.mrf.mxu0
    %v1361 = vadd.f32 0.0, %v1360
    %v1362 = vpop.f32.mrf.mxu0
    %1363 = vmatprep.mubr.f32.mxu0 0.0
    %1364 = vmatmul.mubr.f32.gmra.mxu0 %v1262
    %v1365 = vpop.f32.mrf.mxu0
    %v1366 = vadd.f32 0.0, %v1365
    %v1367 = vpop.f32.mrf.mxu0
    %1368 = vdwg.mxu0
    %v1369 = vmul.f32 %v1331, %v19
    %v1370 = vmul.f32 %v1336, %v20
    %v1371 = vmul.f32 %v1341, %v21
    %v1372 = vmul.f32 %v1346, %v22
    %v1373 = vmul.f32 %v1351, %v23
    %v1374 = vmul.f32 %v1356, %v24
    %v1375 = vmul.f32 %v1361, %v25
    %v1376 = vmul.f32 %v1366, %v26
    %v1377 = vadd.f32 %v1369, %v1371
    %v1378 = vadd.f32 %v1370, %v1372
    %v1379 = vadd.f32 %v1377, %v1373
    %v1380 = vadd.f32 %v1378, %v1374
    %v1381 = vadd.f32 %v1379, %v1375
    %v1382 = vadd.f32 %v1380, %v1376
    %v1383 = vlaneseq
    %v1384 = vshrl.u32 %v1383, 7
    %v1385 = vsub.s32 1, %v1384
    %v1386 = vrot.slane %v929, %v1385
    %v1388 = vsel %vm145, %v1381, 0
    %v1391 = vsel %vm145, %v1382, 0
    %1393 = vmatprep.subr.mxu0 0.0
    %1394 = vmatpush1.msra.mxu0 0.0
    %1395 = vmatprep.subr.mxu0 0.0
    %1396 = vmatpush1.msra.mxu0 0.0
    %1397 = vmatprep.subr.mxu0 0.0
    %1398 = vmatpush1.msra.mxu0 0.0
    %1399 = vmatprep.subr.mxu0 0.0
    %1400 = vmatpush1.msra.mxu0 0.0
    %1401 = vmatprep.subr.mxu0 0.0
    %1402 = vmatpush1.msra.mxu0 0.0
    %1403 = vmatprep.subr.mxu0 0.0
    %1404 = vmatpush1.msra.mxu0 0.0
    %1405 = vmatprep.subr.mxu0 0.0
    %1406 = vmatpush1.msra.mxu0 0.0
    %1407 = vmatprep.subr.mxu0 0.0
    %1408 = vmatpush1.msra.mxu0 0.0
    %1409 = vmatprep.subr.mxu0 0.0
    %1410 = vmatpush1.msra.mxu0 0.0
    %1411 = vmatprep.subr.mxu0 0.0
    %1412 = vmatpush1.msra.mxu0 0.0
    %1413 = vmatprep.subr.mxu0 0.0
    %1414 = vmatpush1.msra.mxu0 0.0
    %1415 = vmatprep.subr.mxu0 0.0
    %1416 = vmatpush1.msra.mxu0 0.0
    %1417 = vmatprep.subr.mxu0 0.0
    %1418 = vmatpush1.msra.mxu0 %v933
    %1419 = vmatprep.subr.mxu0 0.0
    %1420 = vmatpush1.msra.mxu0 %v932
    %1421 = vmatprep.subr.mxu0 0.0
    %1422 = vmatpush1.msra.mxu0 %v931
    %1423 = vmatprep.subr.mxu0 0.0
    %1424 = vmatpush1.msra.mxu0 %v930
    %1425 = vmatprep.subr.mxu0 0.0
    %1426 = vmatpush2.msra.mxu0 0.0
    %1427 = vmatprep.subr.mxu0 0.0
    %1428 = vmatpush2.msra.mxu0 0.0
    %1429 = vmatprep.subr.mxu0 0.0
    %1430 = vmatpush2.msra.mxu0 0.0
    %1431 = vmatprep.subr.mxu0 0.0
    %1432 = vmatpush2.msra.mxu0 0.0
    %1433 = vmatprep.subr.mxu0 0.0
    %1434 = vmatpush2.msra.mxu0 0.0
    %1435 = vmatprep.subr.mxu0 0.0
    %1436 = vmatpush2.msra.mxu0 0.0
    %1437 = vmatprep.subr.mxu0 0.0
    %1438 = vmatpush2.msra.mxu0 0.0
    %1439 = vmatprep.subr.mxu0 0.0
    %1440 = vmatpush2.msra.mxu0 0.0
    %1441 = vmatprep.subr.mxu0 0.0
    %1442 = vmatpush2.msra.mxu0 0.0
    %1443 = vmatprep.subr.mxu0 0.0
    %1444 = vmatpush2.msra.mxu0 0.0
    %1445 = vmatprep.subr.mxu0 0.0
    %1446 = vmatpush2.msra.mxu0 0.0
    %1447 = vmatprep.subr.mxu0 0.0
    %1448 = vmatpush2.msra.mxu0 0.0
    %1449 = vmatprep.subr.mxu0 0.0
    %1450 = vmatpush2.msra.mxu0 0.0
    %1451 = vmatprep.subr.mxu0 0.0
    %1452 = vmatpush2.msra.mxu0 0.0
    %1453 = vmatprep.subr.mxu0 0.0
    %1454 = vmatpush2.msra.mxu0 0.0
    %1455 = vmatprep.subr.mxu0 0.0
    %1456 = vmatpush2.msra.mxu0 0.0
    %1457 = vmatprep.mubr.f32.mxu0 0.0
    %1458 = vmatmul.mubr.f32.gmra.mxu0 %v1388
    %v1459 = vpop.f32.mrf.mxu0
    %v1460 = vadd.f32 %v1386, %v1459
    %v1461 = vpop.f32.mrf.mxu0
    %1462 = vmatprep.mubr.f32.mxu0 0.0
    %1463 = vmatmul.mubr.f32.gmra.mxu0 %v1391
    %v1464 = vpop.f32.mrf.mxu0
    %v1465 = vadd.f32 %v1386, %v1464
    %v1466 = vpop.f32.mrf.mxu0
    %1467 = vdwg.mxu0
    %v1468 = vadd.f32 %v923, %v1460
    %v1469 = vadd.f32 %v924, %v1465
    %v1470 = vsel %vm145, %v1468, 0.0
    %1471 = vadd.xlane.f32.xlu0 %v1470
    %v1472 = vpop.xlane.xlu0 %1471
    %v1473 = vsel %vm145, %v1469, 0.0
    %1474 = vadd.xlane.f32.xlu0 %v1473
    %v1475 = vpop.xlane.xlu0 %1474
    %v1476 = vmul.f32 %v1472, 0.03125
    %v1477 = vmul.f32 %v1475, 0.03125
    %v1478 = vmul.f32 %v1468, %v1468
    %v1479 = vmul.f32 %v1469, %v1469
    %v1480 = vsel %vm145, %v1478, 0.0
    %1481 = vadd.xlane.f32.xlu0 %v1480
    %v1482 = vpop.xlane.xlu0 %1481
    %v1483 = vsel %vm145, %v1479, 0.0
    %1484 = vadd.xlane.f32.xlu0 %v1483
    %v1485 = vpop.xlane.xlu0 %1484
    %v1486 = vmul.f32 %v1482, 0.03125
    %v1487 = vmul.f32 %v1485, 0.03125
    %v1488 = vmul.f32 %v1476, %v1476
    %v1489 = vmul.f32 %v1477, %v1477
    %v1490 = vsub.f32 %v1486, %v1488
    %v1491 = vsub.f32 %v1487, %v1489
    %v1492 = vsub.f32 %v1468, %v1476
    %v1493 = vsub.f32 %v1469, %v1477
    %v1494 = vadd.f32 %v1490, 1e-05
    %v1495 = vadd.f32 %v1491, 1e-05
    %v1496 = vrsqrt.pop %v1494
    %v1497 = vrsqrt.pop %v1495
    %v1498 = vmul.f32 %v1492, %v1496
    %v1499 = vmul.f32 %v1493, %v1497
    %v1500 = vlaneseq
    %v1501 = vshrl.u32 %v1500, 7
    %v1502 = vsub.s32 2, %v1501
    %v1503 = vrot.slane %v929, %v1502
    %v1504 = vmul.f32 %v1498, %v1503
    %v1505 = vmul.f32 %v1499, %v1503
    %v1506 = vlaneseq
    %v1507 = vshrl.u32 %v1506, 7
    %v1508 = vsub.s32 3, %v1507
    %v1509 = vrot.slane %v929, %v1508
    %v1510 = vadd.f32 %v1504, %v1509
    %v1511 = vadd.f32 %v1505, %v1509
    %v1512 = vlaneseq
    %v1513 = vshrl.u32 %v1512, 7
    %v1514 = vsub.s32 4, %v1513
    %v1515 = vrot.slane %v929, %v1514
    %v1517 = vsel %vm145, %v1510, 0
    %v1520 = vsel %vm145, %v1511, 0
    %1522 = vmatprep.subr.mxu0 0.0
    %1523 = vmatpush1.msra.mxu0 0.0
    %1524 = vmatprep.subr.mxu0 0.0
    %1525 = vmatpush1.msra.mxu0 0.0
    %1526 = vmatprep.subr.mxu0 0.0
    %1527 = vmatpush1.msra.mxu0 0.0
    %1528 = vmatprep.subr.mxu0 0.0
    %1529 = vmatpush1.msra.mxu0 0.0
    %1530 = vmatprep.subr.mxu0 0.0
    %1531 = vmatpush1.msra.mxu0 0.0
    %1532 = vmatprep.subr.mxu0 0.0
    %1533 = vmatpush1.msra.mxu0 0.0
    %1534 = vmatprep.subr.mxu0 0.0
    %1535 = vmatpush1.msra.mxu0 0.0
    %1536 = vmatprep.subr.mxu0 0.0
    %1537 = vmatpush1.msra.mxu0 0.0
    %1538 = vmatprep.subr.mxu0 0.0
    %1539 = vmatpush1.msra.mxu0 0.0
    %1540 = vmatprep.subr.mxu0 0.0
    %1541 = vmatpush1.msra.mxu0 0.0
    %1542 = vmatprep.subr.mxu0 0.0
    %1543 = vmatpush1.msra.mxu0 0.0
    %1544 = vmatprep.subr.mxu0 0.0
    %1545 = vmatpush1.msra.mxu0 0.0
    %1546 = vmatprep.subr.mxu0 0.0
    %1547 = vmatpush1.msra.mxu0 %v937
    %1548 = vmatprep.subr.mxu0 0.0
    %1549 = vmatpush1.msra.mxu0 %v936
    %1550 = vmatprep.subr.mxu0 0.0
    %1551 = vmatpush1.msra.mxu0 %v935
    %1552 = vmatprep.subr.mxu0 0.0
    %1553 = vmatpush1.msra.mxu0 %v934
    %1554 = vmatprep.subr.mxu0 0.0
    %1555 = vmatpush2.msra.mxu0 0.0
    %1556 = vmatprep.subr.mxu0 0.0
    %1557 = vmatpush2.msra.mxu0 0.0
    %1558 = vmatprep.subr.mxu0 0.0
    %1559 = vmatpush2.msra.mxu0 0.0
    %1560 = vmatprep.subr.mxu0 0.0
    %1561 = vmatpush2.msra.mxu0 0.0
    %1562 = vmatprep.subr.mxu0 0.0
    %1563 = vmatpush2.msra.mxu0 0.0
    %1564 = vmatprep.subr.mxu0 0.0
    %1565 = vmatpush2.msra.mxu0 0.0
    %1566 = vmatprep.subr.mxu0 0.0
    %1567 = vmatpush2.msra.mxu0 0.0
    %1568 = vmatprep.subr.mxu0 0.0
    %1569 = vmatpush2.msra.mxu0 0.0
    %1570 = vmatprep.subr.mxu0 0.0
    %1571 = vmatpush2.msra.mxu0 0.0
    %1572 = vmatprep.subr.mxu0 0.0
    %1573 = vmatpush2.msra.mxu0 0.0
    %1574 = vmatprep.subr.mxu0 0.0
    %1575 = vmatpush2.msra.mxu0 0.0
    %1576 = vmatprep.subr.mxu0 0.0
    %1577 = vmatpush2.msra.mxu0 0.0
    %1578 = vmatprep.subr.mxu0 0.0
    %1579 = vmatpush2.msra.mxu0 0.0
    %1580 = vmatprep.subr.mxu0 0.0
    %1581 = vmatpush2.msra.mxu0 0.0
    %1582 = vmatprep.subr.mxu0 0.0
    %1583 = vmatpush2.msra.mxu0 0.0
    %1584 = vmatprep.subr.mxu0 0.0
    %1585 = vmatpush2.msra.mxu0 0.0
    %1586 = vmatprep.mubr.f32.mxu0 0.0
    %1587 = vmatmul.mubr.f32.gmra.mxu0 %v1517
    %v1588 = vpop.f32.mrf.mxu0
    %v1589 = vadd.f32 %v1515, %v1588
    %v1590 = vpop.f32.mrf.mxu0
    %1591 = vmatprep.mubr.f32.mxu0 0.0
    %1592 = vmatmul.mubr.f32.gmra.mxu0 %v1520
    %v1593 = vpop.f32.mrf.mxu0
    %v1594 = vadd.f32 %v1515, %v1593
    %v1595 = vpop.f32.mrf.mxu0
    %1596 = vdwg.mxu0
    %v1597 = vmax.f32 %v1589, 0.0
    %v1598 = vmax.f32 %v1594, 0.0
    %v1599 = vlaneseq
    %v1600 = vshrl.u32 %v1599, 7
    %v1601 = vsub.s32 5, %v1600
    %v1602 = vrot.slane %v929, %v1601
    %v1604 = vsel %vm799, %v1597, 0
    %v1607 = vsel %vm799, %v1598, 0
    %1609 = vmatprep.subr.mxu0 0.0
    %1610 = vmatpush1.msra.mxu0 0.0
    %1611 = vmatprep.subr.mxu0 0.0
    %1612 = vmatpush1.msra.mxu0 0.0
    %1613 = vmatprep.subr.mxu0 0.0
    %1614 = vmatpush1.msra.mxu0 0.0
    %1615 = vmatprep.subr.mxu0 0.0
    %1616 = vmatpush1.msra.mxu0 0.0
    %1617 = vmatprep.subr.mxu0 0.0
    %1618 = vmatpush1.msra.mxu0 0.0
    %1619 = vmatprep.subr.mxu0 0.0
    %1620 = vmatpush1.msra.mxu0 0.0
    %1621 = vmatprep.subr.mxu0 0.0
    %1622 = vmatpush1.msra.mxu0 0.0
    %1623 = vmatprep.subr.mxu0 0.0
    %1624 = vmatpush1.msra.mxu0 0.0
    %1625 = vmatprep.subr.mxu0 0.0
    %1626 = vmatpush1.msra.mxu0 %v945
    %1627 = vmatprep.subr.mxu0 0.0
    %1628 = vmatpush1.msra.mxu0 %v944
    %1629 = vmatprep.subr.mxu0 0.0
    %1630 = vmatpush1.msra.mxu0 %v943
    %1631 = vmatprep.subr.mxu0 0.0
    %1632 = vmatpush1.msra.mxu0 %v942
    %1633 = vmatprep.subr.mxu0 0.0
    %1634 = vmatpush1.msra.mxu0 %v941
    %1635 = vmatprep.subr.mxu0 0.0
    %1636 = vmatpush1.msra.mxu0 %v940
    %1637 = vmatprep.subr.mxu0 0.0
    %1638 = vmatpush1.msra.mxu0 %v939
    %1639 = vmatprep.subr.mxu0 0.0
    %1640 = vmatpush1.msra.mxu0 %v938
    %1641 = vmatprep.subr.mxu0 0.0
    %1642 = vmatpush2.msra.mxu0 0.0
    %1643 = vmatprep.subr.mxu0 0.0
    %1644 = vmatpush2.msra.mxu0 0.0
    %1645 = vmatprep.subr.mxu0 0.0
    %1646 = vmatpush2.msra.mxu0 0.0
    %1647 = vmatprep.subr.mxu0 0.0
    %1648 = vmatpush2.msra.mxu0 0.0
    %1649 = vmatprep.subr.mxu0 0.0
    %1650 = vmatpush2.msra.mxu0 0.0
    %1651 = vmatprep.subr.mxu0 0.0
    %1652 = vmatpush2.msra.mxu0 0.0
    %1653 = vmatprep.subr.mxu0 0.0
    %1654 = vmatpush2.msra.mxu0 0.0
    %1655 = vmatprep.subr.mxu0 0.0
    %1656 = vmatpush2.msra.mxu0 0.0
    %1657 = vmatprep.subr.mxu0 0.0
    %1658 = vmatpush2.msra.mxu0 0.0
    %1659 = vmatprep.subr.mxu0 0.0
    %1660 = vmatpush2.msra.mxu0 0.0
    %1661 = vmatprep.subr.mxu0 0.0
    %1662 = vmatpush2.msra.mxu0 0.0
    %1663 = vmatprep.subr.mxu0 0.0
    %1664 = vmatpush2.msra.mxu0 0.0
    %1665 = vmatprep.subr.mxu0 0.0
    %1666 = vmatpush2.msra.mxu0 0.0
    %1667 = vmatprep.subr.mxu0 0.0
    %1668 = vmatpush2.msra.mxu0 0.0
    %1669 = vmatprep.subr.mxu0 0.0
    %1670 = vmatpush2.msra.mxu0 0.0
    %1671 = vmatprep.subr.mxu0 0.0
    %1672 = vmatpush2.msra.mxu0 0.0
    %1673 = vmatprep.mubr.f32.mxu0 0.0
    %1674 = vmatmul.mubr.f32.gmra.mxu0 %v1604
    %v1675 = vpop.f32.mrf.mxu0
    %v1676 = vadd.f32 %v1602, %v1675
    %v1677 = vpop.f32.mrf.mxu0
    %1678 = vmatprep.mubr.f32.mxu0 0.0
    %1679 = vmatmul.mubr.f32.gmra.mxu0 %v1607
    %v1680 = vpop.f32.mrf.mxu0
    %v1681 = vadd.f32 %v1602, %v1680
    %v1682 = vpop.f32.mrf.mxu0
    %1683 = vdwg.mxu0
    %v1684 = vadd.f32 %v1510, %v1676
    %v1685 = vadd.f32 %v1511, %v1681
    %v1686 = vsel %vm145, %v1684, 0.0
    %1687 = vadd.xlane.f32.xlu0 %v1686
    %v1688 = vpop.xlane.xlu0 %1687
    %v1689 = vsel %vm145, %v1685, 0.0
    %1690 = vadd.xlane.f32.xlu0 %v1689
    %v1691 = vpop.xlane.xlu0 %1690
    %v1692 = vmul.f32 %v1688, 0.03125
    %v1693 = vmul.f32 %v1691, 0.03125
    %v1694 = vmul.f32 %v1684, %v1684
    %v1695 = vmul.f32 %v1685, %v1685
    %v1696 = vsel %vm145, %v1694, 0.0
    %1697 = vadd.xlane.f32.xlu0 %v1696
    %v1698 = vpop.xlane.xlu0 %1697
    %v1699 = vsel %vm145, %v1695, 0.0
    %1700 = vadd.xlane.f32.xlu0 %v1699
    %v1701 = vpop.xlane.xlu0 %1700
    %v1702 = vmul.f32 %v1698, 0.03125
    %v1703 = vmul.f32 %v1701, 0.03125
    %v1704 = vmul.f32 %v1692, %v1692
    %v1705 = vmul.f32 %v1693, %v1693
    %v1706 = vsub.f32 %v1702, %v1704
    %v1707 = vsub.f32 %v1703, %v1705
    %v1708 = vsub.f32 %v1684, %v1692
    %v1709 = vsub.f32 %v1685, %v1693
    %v1710 = vadd.f32 %v1706, 1e-05
    %v1711 = vadd.f32 %v1707, 1e-05
    %v1712 = vrsqrt.pop %v1710
    %v1713 = vrsqrt.pop %v1711
    %v1714 = vmul.f32 %v1708, %v1712
    %v1715 = vmul.f32 %v1709, %v1713
    %v1716 = vlaneseq
    %v1717 = vshrl.u32 %v1716, 7
    %v1718 = vsub.s32 6, %v1717
    %v1719 = vrot.slane %v929, %v1718
    %v1720 = vmul.f32 %v1714, %v1719
    %v1721 = vmul.f32 %v1715, %v1719
    %v1722 = vlaneseq
    %v1723 = vshrl.u32 %v1722, 7
    %v1724 = vsub.s32 7, %v1723
    %v1725 = vrot.slane %v929, %v1724
    %v1726 = vadd.f32 %v1720, %v1725
    %v1727 = vadd.f32 %v1721, %v1725
    %v1728 = vld [vmem:[%s1 + $0x160] sm:$0xff]
    %v1729 = vld [vmem:[%s1 + $0x168] sm:$0xff]
    %v1730 = vld [vmem:[%s1 + $0x170] sm:$0xff]
    %v1731 = vld [vmem:[%s1 + $0x178] sm:$0xff]
    %v1732 = vld [vmem:[%s1 + $0x180] sm:$0x1]
    %v1734 = vsel %vm145, %v1726, 0
    %v1737 = vsel %vm145, %v1727, 0
    %1739 = vmatprep.subr.mxu0 0.0
    %1740 = vmatpush1.msra.mxu0 0.0
    %1741 = vmatprep.subr.mxu0 0.0
    %1742 = vmatpush1.msra.mxu0 0.0
    %1743 = vmatprep.subr.mxu0 0.0
    %1744 = vmatpush1.msra.mxu0 0.0
    %1745 = vmatprep.subr.mxu0 0.0
    %1746 = vmatpush1.msra.mxu0 0.0
    %1747 = vmatprep.subr.mxu0 0.0
    %1748 = vmatpush1.msra.mxu0 0.0
    %1749 = vmatprep.subr.mxu0 0.0
    %1750 = vmatpush1.msra.mxu0 0.0
    %1751 = vmatprep.subr.mxu0 0.0
    %1752 = vmatpush1.msra.mxu0 0.0
    %1753 = vmatprep.subr.mxu0 0.0
    %1754 = vmatpush1.msra.mxu0 0.0
    %1755 = vmatprep.subr.mxu0 0.0
    %1756 = vmatpush1.msra.mxu0 0.0
    %1757 = vmatprep.subr.mxu0 0.0
    %1758 = vmatpush1.msra.mxu0 0.0
    %1759 = vmatprep.subr.mxu0 0.0
    %1760 = vmatpush1.msra.mxu0 0.0
    %1761 = vmatprep.subr.mxu0 0.0
    %1762 = vmatpush1.msra.mxu0 0.0
    %1763 = vmatprep.subr.mxu0 0.0
    %1764 = vmatpush1.msra.mxu0 %v1731
    %1765 = vmatprep.subr.mxu0 0.0
    %1766 = vmatpush1.msra.mxu0 %v1730
    %1767 = vmatprep.subr.mxu0 0.0
    %1768 = vmatpush1.msra.mxu0 %v1729
    %1769 = vmatprep.subr.mxu0 0.0
    %1770 = vmatpush1.msra.mxu0 %v1728
    %1771 = vmatprep.subr.mxu0 0.0
    %1772 = vmatpush2.msra.mxu0 0.0
    %1773 = vmatprep.subr.mxu0 0.0
    %1774 = vmatpush2.msra.mxu0 0.0
    %1775 = vmatprep.subr.mxu0 0.0
    %1776 = vmatpush2.msra.mxu0 0.0
    %1777 = vmatprep.subr.mxu0 0.0
    %1778 = vmatpush2.msra.mxu0 0.0
    %1779 = vmatprep.subr.mxu0 0.0
    %1780 = vmatpush2.msra.mxu0 0.0
    %1781 = vmatprep.subr.mxu0 0.0
    %1782 = vmatpush2.msra.mxu0 0.0
    %1783 = vmatprep.subr.mxu0 0.0
    %1784 = vmatpush2.msra.mxu0 0.0
    %1785 = vmatprep.subr.mxu0 0.0
    %1786 = vmatpush2.msra.mxu0 0.0
    %1787 = vmatprep.subr.mxu0 0.0
    %1788 = vmatpush2.msra.mxu0 0.0
    %1789 = vmatprep.subr.mxu0 0.0
    %1790 = vmatpush2.msra.mxu0 0.0
    %1791 = vmatprep.subr.mxu0 0.0
    %1792 = vmatpush2.msra.mxu0 0.0
    %1793 = vmatprep.subr.mxu0 0.0
    %1794 = vmatpush2.msra.mxu0 0.0
    %1795 = vmatprep.subr.mxu0 0.0
    %1796 = vmatpush2.msra.mxu0 0.0
    %1797 = vmatprep.subr.mxu0 0.0
    %1798 = vmatpush2.msra.mxu0 0.0
    %1799 = vmatprep.subr.mxu0 0.0
    %1800 = vmatpush2.msra.mxu0 0.0
    %1801 = vmatprep.subr.mxu0 0.0
    %1802 = vmatpush2.msra.mxu0 0.0
    %1803 = vmatprep.mubr.f32.mxu0 0.0
    %1804 = vmatmul.mubr.f32.gmra.mxu0 %v1734
    %v1805 = vpop.f32.mrf.mxu0
    %v1806 = vadd.f32 0.0, %v1805
    %v1807 = vpop.f32.mrf.mxu0
    %1808 = vmatprep.mubr.f32.mxu0 0.0
    %1809 = vmatmul.mubr.f32.gmra.mxu0 %v1737
    %v1810 = vpop.f32.mrf.mxu0
    %v1811 = vadd.f32 0.0, %v1810
    %v1812 = vpop.f32.mrf.mxu0
    %1813 = vdwg.mxu0
    %v1814 = vlaneseq
    %v1815 = vshrl.u32 %v1814, 7
    %v1816 = vsub.s32 0, %v1815
    %v1817 = vrot.slane %v1732, %v1816
    %v1819 = vsel %vm38, %v35, 0
    %1821 = vmatprep.subr.mxu0 0.0
    %1822 = vmatpush1.msra.mxu0 0.0
    %1823 = vmatprep.subr.mxu0 0.0
    %1824 = vmatpush1.msra.mxu0 0.0
    %1825 = vmatprep.subr.mxu0 0.0
    %1826 = vmatpush1.msra.mxu0 0.0
    %1827 = vmatprep.subr.mxu0 0.0
    %1828 = vmatpush1.msra.mxu0 0.0
    %1829 = vmatprep.subr.mxu0 0.0
    %1830 = vmatpush1.msra.mxu0 0.0
    %1831 = vmatprep.subr.mxu0 0.0
    %1832 = vmatpush1.msra.mxu0 0.0
    %1833 = vmatprep.subr.mxu0 0.0
    %1834 = vmatpush1.msra.mxu0 0.0
    %1835 = vmatprep.subr.mxu0 0.0
    %1836 = vmatpush1.msra.mxu0 0.0
    %1837 = vmatprep.subr.mxu0 0.0
    %1838 = vmatpush1.msra.mxu0 0.0
    %1839 = vmatprep.subr.mxu0 0.0
    %1840 = vmatpush1.msra.mxu0 0.0
    %1841 = vmatprep.subr.mxu0 0.0
    %1842 = vmatpush1.msra.mxu0 0.0
    %1843 = vmatprep.subr.mxu0 0.0
    %1844 = vmatpush1.msra.mxu0 0.0
    %1845 = vmatprep.subr.mxu0 0.0
    %1846 = vmatpush1.msra.mxu0 0.0
    %1847 = vmatprep.subr.mxu0 0.0
    %1848 = vmatpush1.msra.mxu0 0.0
    %1849 = vmatprep.subr.mxu0 0.0
    %1850 = vmatpush1.msra.mxu0 %v1811
    %1851 = vmatprep.subr.mxu0 0.0
    %1852 = vmatpush1.msra.mxu0 %v1806
    %1853 = vmatprep.subr.mxu0 0.0
    %1854 = vmatpush2.msra.mxu0 0.0
    %1855 = vmatprep.subr.mxu0 0.0
    %1856 = vmatpush2.msra.mxu0 0.0
    %1857 = vmatprep.subr.mxu0 0.0
    %1858 = vmatpush2.msra.mxu0 0.0
    %1859 = vmatprep.subr.mxu0 0.0
    %1860 = vmatpush2.msra.mxu0 0.0
    %1861 = vmatprep.subr.mxu0 0.0
    %1862 = vmatpush2.msra.mxu0 0.0
    %1863 = vmatprep.subr.mxu0 0.0
    %1864 = vmatpush2.msra.mxu0 0.0
    %1865 = vmatprep.subr.mxu0 0.0
    %1866 = vmatpush2.msra.mxu0 0.0
    %1867 = vmatprep.subr.mxu0 0.0
    %1868 = vmatpush2.msra.mxu0 0.0
    %1869 = vmatprep.subr.mxu0 0.0
    %1870 = vmatpush2.msra.mxu0 0.0
    %1871 = vmatprep.subr.mxu0 0.0
    %1872 = vmatpush2.msra.mxu0 0.0
    %1873 = vmatprep.subr.mxu0 0.0
    %1874 = vmatpush2.msra.mxu0 0.0
    %1875 = vmatprep.subr.mxu0 0.0
    %1876 = vmatpush2.msra.mxu0 0.0
    %1877 = vmatprep.subr.mxu0 0.0
    %1878 = vmatpush2.msra.mxu0 0.0
    %1879 = vmatprep.subr.mxu0 0.0
    %1880 = vmatpush2.msra.mxu0 0.0
    %1881 = vmatprep.subr.mxu0 0.0
    %1882 = vmatpush2.msra.mxu0 0.0
    %1883 = vmatprep.subr.mxu0 0.0
    %1884 = vmatpush2.msra.mxu0 0.0
    %1885 = vmatprep.mubr.f32.mxu0 0.0
    %1886 = vmatmul.mubr.f32.gmra.mxu0 %v1819
    %v1887 = vpop.f32.mrf.mxu0
    %v1888 = vadd.f32 %v1817, %v1887
    %v1889 = vpop.f32.mrf.mxu0
    %1890 = vdwg.mxu0
    %vm1891 = vcmask 123904
    %1892 = vst.msk [vmem:[#allocation2] sm:$0x3] %vm1891, %v1888
    // Predicated region
    $region14: #{transformer_forward.1} parent=1 // pred_check
      _
    $region15: #{transformer_forward.1} parent=1 // pred_check_branch
      %1894 = sbr.rel (0) target = $region17
    $region16: #{transformer_forward.1} parent=1 // pred_region
      %s1896 = ssub.s32 32, 32
      %1897 = vsyncadd [#allocation3], %s1896
      %s1899 = sshll.u32 [#allocation2], 4
      %s1900 = int_to_ptr.vmem [resolvable:$true] %s1899
      %1902 = dma.vmem_to_hbm [thread:$0]  %s1900, 32, %s3, [#allocation3]
    $region17: #{transformer_forward.1} parent=1 // pred_fallthru
      _
    // Predicated region
    $region18: #{transformer_forward.1} parent=1 // pred_check
      _
    $region19: #{transformer_forward.1} parent=1 // pred_check_branch
      %1904 = sbr.rel (0) target = $region21
    $region20: #{transformer_forward.1} parent=1 // pred_region
      %1905 = dma.done [#allocation3], 32
    $region21: #{transformer_forward.1} parent=1 // pred_fallthru
      _
    %1906 = vsyncpa [#allocation3], 1

</llo_original>
